<compile_context>
chip_gen: v7x
topology: tpu7x:2x2x1
jax: 0.10.0
libtpu: 0.0.40
codegen_flags: <defaults>
</compile_context>

<pallas_src>
import jax
import jax.numpy as jnp
from jax.experimental import pallas as pl
from jax.experimental.pallas import tpu as pltpu

EPS = 1e-5


# ---------------------------------------------------------------------------
# Fused kernel: y = W @ X (bf16 MXU, f32 acc), then BN with batch statistics.
# ---------------------------------------------------------------------------
def _fused_conv_bn_kernel(w_ref, x_ref, g_ref, b_ref, o_ref):
    # w_ref: (C_out, C_in) f32   -> cast to bf16 in-kernel
    # x_ref: (C_in,  M)    f32   -> cast to bf16 in-kernel
    # g_ref: (C_out, 1)    f32   (BN gamma)
    # b_ref: (C_out, 1)    f32   (BN beta)
    # o_ref: (C_out, M)    f32
    w = w_ref[...].astype(jnp.bfloat16)
    x = x_ref[...].astype(jnp.bfloat16)

    # 1x1 conv as matmul; f32 accumulation on the MXU.
    y = jnp.dot(w, x, preferred_element_type=jnp.float32)        # (C_out, M)

    m = jnp.float32(y.shape[1])
    mean = jnp.sum(y, axis=1, keepdims=True) / m                  # (C_out, 1)
    centered = y - mean
    var = jnp.sum(centered * centered, axis=1, keepdims=True) / m  # biased var
    inv_std = jax.lax.rsqrt(var + EPS)

    scale = g_ref[...] * inv_std                                   # (C_out, 1)
    o_ref[...] = centered * scale + b_ref[...]


def conv1x1_bn(x_nchw, weight, gamma, beta):
    """x_nchw: (N, C_in, H, W); weight: (C_out, C_in, 1, 1); gamma/beta: (C_out,)."""
    N, C_in, H, W = x_nchw.shape
    C_out = weight.shape[0]
    M = N * H * W

    # NCHW -> (C_in, N*H*W).  For N == 1 this is a pure reshape (no HBM pass).
    x_mat = jnp.transpose(x_nchw, (1, 0, 2, 3)).reshape(C_in, M)
    w_mat = weight.reshape(C_out, C_in)
    g = gamma.reshape(C_out, 1).astype(jnp.float32)
    b = beta.reshape(C_out, 1).astype(jnp.float32)

    vmem = pl.BlockSpec(memory_space=pltpu.MemorySpace.VMEM)

    out_mat = pl.pallas_call(
        _fused_conv_bn_kernel,
        out_shape=jax.ShapeDtypeStruct((C_out, M), jnp.float32),
        in_specs=[vmem, vmem, vmem, vmem],
        out_specs=vmem,
        compiler_params=pltpu.CompilerParams(
            vmem_limit_bytes=32 * 1024 * 1024,
        ),
    )(w_mat, x_mat, g, b)

    # (C_out, N*H*W) -> (N, C_out, H, W).  Free for N == 1.
    out = out_mat.reshape(C_out, N, H, W)
    return jnp.transpose(out, (1, 0, 2, 3))


def _reference(x_nchw, weight, gamma, beta):
    """Pure-JAX reference with the same bf16-in / f32-accumulate matmul."""
    N, C_in, H, W = x_nchw.shape
    C_out = weight.shape[0]
    x_mat = jnp.transpose(x_nchw, (1, 0, 2, 3)).reshape(C_in, -1).astype(jnp.bfloat16)
    w_mat = weight.reshape(C_out, C_in).astype(jnp.bfloat16)
    y = jnp.dot(w_mat, x_mat, preferred_element_type=jnp.float32)
    mean = jnp.mean(y, axis=1, keepdims=True)
    var = jnp.mean((y - mean) ** 2, axis=1, keepdims=True)
    y_hat = (y - mean) * jax.lax.rsqrt(var + EPS)
    out = y_hat * gamma.reshape(C_out, 1) + beta.reshape(C_out, 1)
    return jnp.transpose(out.reshape(C_out, N, H, W), (1, 0, 2, 3))


if __name__ == "__main__":
    key = jax.random.PRNGKey(0)
    k_x, k_w = jax.random.split(key)

    # Shapes from the module: Conv2d(864 -> 144, 1x1) on a (1, 864, 14, 14) input.
    N, C_in, H, W = 1, 864, 14, 14
    C_out = 144

    x = jax.random.normal(k_x, (N, C_in, H, W), dtype=jnp.float32)

    # Synthetic deterministic params (not a checkpoint): small-normal conv
    # weight; BatchNorm affine at PyTorch defaults (weight=1, bias=0).
    weight = 0.05 * jax.random.normal(k_w, (C_out, C_in, 1, 1), dtype=jnp.float32)
    gamma = jnp.ones((C_out,), dtype=jnp.float32)
    beta = jnp.zeros((C_out,), dtype=jnp.float32)

    fn = jax.jit(conv1x1_bn)
    out = fn(x, weight, gamma, beta)
    jax.block_until_ready(out)

    assert out.shape == (N, C_out, H, W)

    ref = _reference(x, weight, gamma, beta)
    max_err = float(jnp.max(jnp.abs(out - ref)))
    assert max_err < 1e-2, f"max abs error vs reference: {max_err}"

    print("KERNEL_OK")
</pallas_src>

<mosaic_0001>
module attributes {stable_mosaic.version = 11 : i64} {
  func.func @_fused_conv_bn_kernel(%arg0: memref<144x864xf32, #tpu.memory_space<vmem>>, %arg1: memref<864x196xf32, #tpu.memory_space<vmem>>, %arg2: memref<144x1xf32, #tpu.memory_space<vmem>>, %arg3: memref<144x1xf32, #tpu.memory_space<vmem>>, %arg4: memref<144x196xf32, #tpu.memory_space<vmem>>) attributes {dimension_semantics = [], scalar_prefetch = 0 : i64, scratch_operands = 0 : i64, tpu.core_type = #tpu.core_type<tc>} {
    %c0 = arith.constant 0 : index
    %c0_0 = arith.constant 0 : index
    %0 = vector.load %arg0[%c0, %c0_0] : memref<144x864xf32, #tpu.memory_space<vmem>>, vector<144x864xf32>
    %1 = arith.truncf %0 : vector<144x864xf32> to vector<144x864xbf16>
    %c0_1 = arith.constant 0 : index
    %c0_2 = arith.constant 0 : index
    %2 = vector.load %arg1[%c0_1, %c0_2] : memref<864x196xf32, #tpu.memory_space<vmem>>, vector<864x196xf32>
    %3 = arith.truncf %2 : vector<864x196xf32> to vector<864x196xbf16>
    %cst = arith.constant dense<0.000000e+00> : vector<144x196xf32>
    %4 = tpu.matmul %1, %3, %cst {dimension_numbers = #tpu.dot_dimension_numbers<[1], [0], [0], [1], [0, 0, 1, 1], [], []>} : vector<144x864xbf16>, vector<864x196xbf16>, vector<144x196xf32> -> vector<144x196xf32>
    %cst_3 = arith.constant dense<0.000000e+00> : vector<144xf32>
    %5 = vector.multi_reduction <add>, %4, %cst_3 [1] : vector<144x196xf32> to vector<144xf32>
    %6 = vector.shape_cast %5 : vector<144xf32> to vector<144x1xf32>
    %cst_4 = arith.constant 1.960000e+02 : f32
    %7 = vector.broadcast %cst_4 : f32 to vector<144x1xf32>
    %8 = arith.divf %6, %7 : vector<144x1xf32>
    %9 = vector.broadcast %8 : vector<144x1xf32> to vector<144x196xf32>
    %10 = arith.subf %4, %9 : vector<144x196xf32>
    %11 = arith.mulf %10, %10 : vector<144x196xf32>
    %cst_5 = arith.constant dense<0.000000e+00> : vector<144xf32>
    %12 = vector.multi_reduction <add>, %11, %cst_5 [1] : vector<144x196xf32> to vector<144xf32>
    %13 = vector.shape_cast %12 : vector<144xf32> to vector<144x1xf32>
    %cst_6 = arith.constant 1.960000e+02 : f32
    %14 = vector.broadcast %cst_6 : f32 to vector<144x1xf32>
    %15 = arith.divf %13, %14 : vector<144x1xf32>
    %cst_7 = arith.constant 9.99999974E-6 : f32
    %16 = vector.broadcast %cst_7 : f32 to vector<144x1xf32>
    %17 = arith.addf %15, %16 : vector<144x1xf32>
    %18 = math.rsqrt %17 : vector<144x1xf32>
    %c0_8 = arith.constant 0 : index
    %c0_9 = arith.constant 0 : index
    %19 = vector.load %arg2[%c0_8, %c0_9] : memref<144x1xf32, #tpu.memory_space<vmem>>, vector<144x1xf32>
    %20 = arith.mulf %19, %18 : vector<144x1xf32>
    %21 = vector.broadcast %20 : vector<144x1xf32> to vector<144x196xf32>
    %22 = arith.mulf %10, %21 : vector<144x196xf32>
    %c0_10 = arith.constant 0 : index
    %c0_11 = arith.constant 0 : index
    %23 = vector.load %arg3[%c0_10, %c0_11] : memref<144x1xf32, #tpu.memory_space<vmem>>, vector<144x1xf32>
    %24 = vector.broadcast %23 : vector<144x1xf32> to vector<144x196xf32>
    %25 = arith.addf %22, %24 : vector<144x196xf32>
    %c0_12 = arith.constant 0 : index
    %c0_13 = arith.constant 0 : index
    %26 = vector.load %arg4[%c0_12, %c0_13] : memref<144x196xf32, #tpu.memory_space<vmem>>, vector<144x196xf32>
    tpu.vector_store %arg4[%c0_12, %c0_13], %25 {strides = array<i32>} : memref<144x196xf32, #tpu.memory_space<vmem>>, vector<144x196xf32>,
    return
  }
}

</mosaic_0001>

<llo_original>
// kernel: conv1x1_bn.1
$region0: #{conv1x1_bn.1}
  #allocation0 [shape = 'u32[]', space=smem, size = 0x4, offset = 0x4, fixed_abs, tag = 'smem constant byte address 0x4 - core index']
  #allocation1 [shape = 'u32[144,128]{1,0:T(1,128)}', space=vmem, size = 0x12000, scoped, tag = 'internal scratch']
  %s0 = inlined_call_operand.vmem [shape: f32[144,864], index: 0, kind: input, shape index: {}]
  %s1 = inlined_call_operand.vmem [shape: f32[864,196], index: 1, kind: input, shape index: {}]
  %s2 = inlined_call_operand.vmem [shape: f32[144,1], index: 2, kind: input, shape index: {}]
  %s3 = inlined_call_operand.vmem [shape: f32[144,1], index: 3, kind: input, shape index: {}]
  %s4 = inlined_call_operand.vmem [shape: f32[144,196], index: 4, kind: output, shape index: {}]
  %s5 = sld [smem:[#allocation0]]
  $region26: #{conv1x1_bn.1} parent=0
    _
  %s7 = ssub.s32 1, %s5
  %s8 = scalar_select 0, %s7, %s5
  // Predicated region
  $region2: #{conv1x1_bn.1} parent=0 // pred_check
    _
  $region3: #{conv1x1_bn.1} parent=0 // pred_check_branch
    %10 = sbr.rel (0) target = $region5
  $region4: #{conv1x1_bn.1} parent=0 // pred_region
    _
  $region5: #{conv1x1_bn.1} parent=0 // pred_fallthru
    _
  // Predicated region
  $region6: #{conv1x1_bn.1} parent=0 // pred_check
    _
  $region7: #{conv1x1_bn.1} parent=0 // pred_check_branch
    %12 = sbr.rel (0) target = $region9
  $region8: #{conv1x1_bn.1} parent=0 // pred_region
    _
  $region9: #{conv1x1_bn.1} parent=0 // pred_fallthru
    _
  // Predicated region
  $region10: #{conv1x1_bn.1} parent=0 // pred_check
    _
  $region11: #{conv1x1_bn.1} parent=0 // pred_check_branch
    %14 = sbr.rel (0) target = $region13
  $region12: #{conv1x1_bn.1} parent=0 // pred_region
    _
  $region13: #{conv1x1_bn.1} parent=0 // pred_fallthru
    _
  // Predicated region
  $region14: #{conv1x1_bn.1} parent=0 // pred_check
    _
  $region15: #{conv1x1_bn.1} parent=0 // pred_check_branch
    %16 = sbr.rel (0) target = $region17
  $region16: #{conv1x1_bn.1} parent=0 // pred_region
    _
  $region17: #{conv1x1_bn.1} parent=0 // pred_fallthru
    _
  %v18 = vld [vmem:[%s0] sm:$0xff]
  %v19 = vld [vmem:[%s0 + $0x8] sm:$0xff]
  %v20 = vld [vmem:[%s0 + $0x10] sm:$0xff]
  %v21 = vld [vmem:[%s0 + $0x18] sm:$0xff]
  %v22 = vld [vmem:[%s0 + $0x20] sm:$0xff]
  %v23 = vld [vmem:[%s0 + $0x28] sm:$0xff]
  %v24 = vld [vmem:[%s0 + $0x30] sm:$0xff]
  %v25 = vld [vmem:[%s0 + $0x38] sm:$0xff]
  %v26 = vld [vmem:[%s0 + $0x40] sm:$0xff]
  %v27 = vld [vmem:[%s0 + $0x48] sm:$0xff]
  %v28 = vld [vmem:[%s0 + $0x50] sm:$0xff]
  %v29 = vld [vmem:[%s0 + $0x58] sm:$0xff]
  %v30 = vld [vmem:[%s0 + $0x60] sm:$0xff]
  %v31 = vld [vmem:[%s0 + $0x68] sm:$0xff]
  %v32 = vld [vmem:[%s0 + $0x70] sm:$0xff]
  %v33 = vld [vmem:[%s0 + $0x78] sm:$0xff]
  %v34 = vld [vmem:[%s0 + $0x80] sm:$0xff]
  %v35 = vld [vmem:[%s0 + $0x88] sm:$0xff]
  %v36 = vld [vmem:[%s0 + $0x90] sm:$0xff]
  %v37 = vld [vmem:[%s0 + $0x98] sm:$0xff]
  %v38 = vld [vmem:[%s0 + $0xa0] sm:$0xff]
  %v39 = vld [vmem:[%s0 + $0xa8] sm:$0xff]
  %v40 = vld [vmem:[%s0 + $0xb0] sm:$0xff]
  %v41 = vld [vmem:[%s0 + $0xb8] sm:$0xff]
  %v42 = vld [vmem:[%s0 + $0xc0] sm:$0xff]
  %v43 = vld [vmem:[%s0 + $0xc8] sm:$0xff]
  %v44 = vld [vmem:[%s0 + $0xd0] sm:$0xff]
  %v45 = vld [vmem:[%s0 + $0xd8] sm:$0xff]
  %v46 = vld [vmem:[%s0 + $0xe0] sm:$0xff]
  %v47 = vld [vmem:[%s0 + $0xe8] sm:$0xff]
  %v48 = vld [vmem:[%s0 + $0xf0] sm:$0xff]
  %v49 = vld [vmem:[%s0 + $0xf8] sm:$0xff]
  %v50 = vld [vmem:[%s0 + $0x100] sm:$0xff]
  %v51 = vld [vmem:[%s0 + $0x108] sm:$0xff]
  %v52 = vld [vmem:[%s0 + $0x110] sm:$0xff]
  %v53 = vld [vmem:[%s0 + $0x118] sm:$0xff]
  %v54 = vld [vmem:[%s0 + $0x120] sm:$0xff]
  %v55 = vld [vmem:[%s0 + $0x128] sm:$0xff]
  %v56 = vld [vmem:[%s0 + $0x130] sm:$0xff]
  %v57 = vld [vmem:[%s0 + $0x138] sm:$0xff]
  %v58 = vld [vmem:[%s0 + $0x140] sm:$0xff]
  %v59 = vld [vmem:[%s0 + $0x148] sm:$0xff]
  %v60 = vld [vmem:[%s0 + $0x150] sm:$0xff]
  %v61 = vld [vmem:[%s0 + $0x158] sm:$0xff]
  %v62 = vld [vmem:[%s0 + $0x160] sm:$0xff]
  %v63 = vld [vmem:[%s0 + $0x168] sm:$0xff]
  %v64 = vld [vmem:[%s0 + $0x170] sm:$0xff]
  %v65 = vld [vmem:[%s0 + $0x178] sm:$0xff]
  %v66 = vld [vmem:[%s0 + $0x180] sm:$0xff]
  %v67 = vld [vmem:[%s0 + $0x188] sm:$0xff]
  %v68 = vld [vmem:[%s0 + $0x190] sm:$0xff]
  %v69 = vld [vmem:[%s0 + $0x198] sm:$0xff]
  %v70 = vld [vmem:[%s0 + $0x1a0] sm:$0xff]
  %v71 = vld [vmem:[%s0 + $0x1a8] sm:$0xff]
  %v72 = vld [vmem:[%s0 + $0x1b0] sm:$0xff]
  %v73 = vld [vmem:[%s0 + $0x1b8] sm:$0xff]
  %v74 = vld [vmem:[%s0 + $0x1c0] sm:$0xff]
  %v75 = vld [vmem:[%s0 + $0x1c8] sm:$0xff]
  %v76 = vld [vmem:[%s0 + $0x1d0] sm:$0xff]
  %v77 = vld [vmem:[%s0 + $0x1d8] sm:$0xff]
  %v78 = vld [vmem:[%s0 + $0x1e0] sm:$0xff]
  %v79 = vld [vmem:[%s0 + $0x1e8] sm:$0xff]
  %v80 = vld [vmem:[%s0 + $0x1f0] sm:$0xff]
  %v81 = vld [vmem:[%s0 + $0x1f8] sm:$0xff]
  %v82 = vld [vmem:[%s0 + $0x200] sm:$0xff]
  %v83 = vld [vmem:[%s0 + $0x208] sm:$0xff]
  %v84 = vld [vmem:[%s0 + $0x210] sm:$0xff]
  %v85 = vld [vmem:[%s0 + $0x218] sm:$0xff]
  %v86 = vld [vmem:[%s0 + $0x220] sm:$0xff]
  %v87 = vld [vmem:[%s0 + $0x228] sm:$0xff]
  %v88 = vld [vmem:[%s0 + $0x230] sm:$0xff]
  %v89 = vld [vmem:[%s0 + $0x238] sm:$0xff]
  %v90 = vld [vmem:[%s0 + $0x240] sm:$0xff]
  %v91 = vld [vmem:[%s0 + $0x248] sm:$0xff]
  %v92 = vld [vmem:[%s0 + $0x250] sm:$0xff]
  %v93 = vld [vmem:[%s0 + $0x258] sm:$0xff]
  %v94 = vld [vmem:[%s0 + $0x260] sm:$0xff]
  %v95 = vld [vmem:[%s0 + $0x268] sm:$0xff]
  %v96 = vld [vmem:[%s0 + $0x270] sm:$0xff]
  %v97 = vld [vmem:[%s0 + $0x278] sm:$0xff]
  %v98 = vld [vmem:[%s0 + $0x280] sm:$0xff]
  %v99 = vld [vmem:[%s0 + $0x288] sm:$0xff]
  %v100 = vld [vmem:[%s0 + $0x290] sm:$0xff]
  %v101 = vld [vmem:[%s0 + $0x298] sm:$0xff]
  %v102 = vld [vmem:[%s0 + $0x2a0] sm:$0xff]
  %v103 = vld [vmem:[%s0 + $0x2a8] sm:$0xff]
  %v104 = vld [vmem:[%s0 + $0x2b0] sm:$0xff]
  %v105 = vld [vmem:[%s0 + $0x2b8] sm:$0xff]
  %v106 = vld [vmem:[%s0 + $0x2c0] sm:$0xff]
  %v107 = vld [vmem:[%s0 + $0x2c8] sm:$0xff]
  %v108 = vld [vmem:[%s0 + $0x2d0] sm:$0xff]
  %v109 = vld [vmem:[%s0 + $0x2d8] sm:$0xff]
  %v110 = vld [vmem:[%s0 + $0x2e0] sm:$0xff]
  %v111 = vld [vmem:[%s0 + $0x2e8] sm:$0xff]
  %v112 = vld [vmem:[%s0 + $0x2f0] sm:$0xff]
  %v113 = vld [vmem:[%s0 + $0x2f8] sm:$0xff]
  %v114 = vld [vmem:[%s0 + $0x300] sm:$0xff]
  %v115 = vld [vmem:[%s0 + $0x308] sm:$0xff]
  %v116 = vld [vmem:[%s0 + $0x310] sm:$0xff]
  %v117 = vld [vmem:[%s0 + $0x318] sm:$0xff]
  %v118 = vld [vmem:[%s0 + $0x320] sm:$0xff]
  %v119 = vld [vmem:[%s0 + $0x328] sm:$0xff]
  %v120 = vld [vmem:[%s0 + $0x330] sm:$0xff]
  %v121 = vld [vmem:[%s0 + $0x338] sm:$0xff]
  %v122 = vld [vmem:[%s0 + $0x340] sm:$0xff]
  %v123 = vld [vmem:[%s0 + $0x348] sm:$0xff]
  %v124 = vld [vmem:[%s0 + $0x350] sm:$0xff]
  %v125 = vld [vmem:[%s0 + $0x358] sm:$0xff]
  %v126 = vld [vmem:[%s0 + $0x360] sm:$0xff]
  %v127 = vld [vmem:[%s0 + $0x368] sm:$0xff]
  %v128 = vld [vmem:[%s0 + $0x370] sm:$0xff]
  %v129 = vld [vmem:[%s0 + $0x378] sm:$0xff]
  %v130 = vld [vmem:[%s0 + $0x380] sm:$0xff]
  %v131 = vld [vmem:[%s0 + $0x388] sm:$0xff]
  %v132 = vld [vmem:[%s0 + $0x390] sm:$0xff]
  %v133 = vld [vmem:[%s0 + $0x398] sm:$0xff]
  %v134 = vld [vmem:[%s0 + $0x3a0] sm:$0xff]
  %v135 = vld [vmem:[%s0 + $0x3a8] sm:$0xff]
  %v136 = vld [vmem:[%s0 + $0x3b0] sm:$0xff]
  %v137 = vld [vmem:[%s0 + $0x3b8] sm:$0xff]
  %v138 = vld [vmem:[%s0 + $0x3c0] sm:$0xff]
  %v139 = vld [vmem:[%s0 + $0x3c8] sm:$0xff]
  %v140 = vld [vmem:[%s0 + $0x3d0] sm:$0xff]
  %v141 = vld [vmem:[%s0 + $0x3d8] sm:$0xff]
  %v142 = vld [vmem:[%s0 + $0x3e0] sm:$0xff]
  %v143 = vld [vmem:[%s0 + $0x3e8] sm:$0xff]
  %v144 = vpack.c.bf16 %v25, %v18
  %v145 = vpack.c.bf16 %v26, %v19
  %v146 = vpack.c.bf16 %v27, %v20
  %v147 = vpack.c.bf16 %v28, %v21
  %v148 = vpack.c.bf16 %v29, %v22
  %v149 = vpack.c.bf16 %v30, %v23
  %v150 = vpack.c.bf16 %v31, %v24
  %v151 = vpack.c.bf16 %v39, %v32
  %v152 = vpack.c.bf16 %v40, %v33
  %v153 = vpack.c.bf16 %v41, %v34
  %v154 = vpack.c.bf16 %v42, %v35
  %v155 = vpack.c.bf16 %v43, %v36
  %v156 = vpack.c.bf16 %v44, %v37
  %v157 = vpack.c.bf16 %v45, %v38
  %v158 = vpack.c.bf16 %v53, %v46
  %v159 = vpack.c.bf16 %v54, %v47
  %v160 = vpack.c.bf16 %v55, %v48
  %v161 = vpack.c.bf16 %v56, %v49
  %v162 = vpack.c.bf16 %v57, %v50
  %v163 = vpack.c.bf16 %v58, %v51
  %v164 = vpack.c.bf16 %v59, %v52
  %v165 = vpack.c.bf16 %v67, %v60
  %v166 = vpack.c.bf16 %v68, %v61
  %v167 = vpack.c.bf16 %v69, %v62
  %v168 = vpack.c.bf16 %v70, %v63
  %v169 = vpack.c.bf16 %v71, %v64
  %v170 = vpack.c.bf16 %v72, %v65
  %v171 = vpack.c.bf16 %v73, %v66
  %v172 = vpack.c.bf16 %v81, %v74
  %v173 = vpack.c.bf16 %v82, %v75
  %v174 = vpack.c.bf16 %v83, %v76
  %v175 = vpack.c.bf16 %v84, %v77
  %v176 = vpack.c.bf16 %v85, %v78
  %v177 = vpack.c.bf16 %v86, %v79
  %v178 = vpack.c.bf16 %v87, %v80
  %v179 = vpack.c.bf16 %v95, %v88
  %v180 = vpack.c.bf16 %v96, %v89
  %v181 = vpack.c.bf16 %v97, %v90
  %v182 = vpack.c.bf16 %v98, %v91
  %v183 = vpack.c.bf16 %v99, %v92
  %v184 = vpack.c.bf16 %v100, %v93
  %v185 = vpack.c.bf16 %v101, %v94
  %v186 = vpack.c.bf16 %v109, %v102
  %v187 = vpack.c.bf16 %v110, %v103
  %v188 = vpack.c.bf16 %v111, %v104
  %v189 = vpack.c.bf16 %v112, %v105
  %v190 = vpack.c.bf16 %v113, %v106
  %v191 = vpack.c.bf16 %v114, %v107
  %v192 = vpack.c.bf16 %v115, %v108
  %v193 = vpack.c.bf16 %v123, %v116
  %v194 = vpack.c.bf16 %v124, %v117
  %v195 = vpack.c.bf16 %v125, %v118
  %v196 = vpack.c.bf16 %v126, %v119
  %v197 = vpack.c.bf16 %v127, %v120
  %v198 = vpack.c.bf16 %v128, %v121
  %v199 = vpack.c.bf16 %v129, %v122
  %v200 = vpack.c.bf16 %v137, %v130
  %v201 = vpack.c.bf16 %v138, %v131
  %v202 = vpack.c.bf16 %v139, %v132
  %v203 = vpack.c.bf16 %v140, %v133
  %v204 = vpack.c.bf16 %v141, %v134
  %v205 = vpack.c.bf16 %v142, %v135
  %v206 = vpack.c.bf16 %v143, %v136
  %v207 = vld [vmem:[%s1] sm:$0xff]
  %v208 = vld [vmem:[%s1 + $0x8] sm:$0xff]
  %v209 = vld [vmem:[%s1 + $0x10] sm:$0xff]
  %v210 = vld [vmem:[%s1 + $0x18] sm:$0xff]
  %v211 = vld [vmem:[%s1 + $0x20] sm:$0xff]
  %v212 = vld [vmem:[%s1 + $0x28] sm:$0xff]
  %v213 = vld [vmem:[%s1 + $0x30] sm:$0xff]
  %v214 = vld [vmem:[%s1 + $0x38] sm:$0xff]
  %v215 = vld [vmem:[%s1 + $0x40] sm:$0xff]
  %v216 = vld [vmem:[%s1 + $0x48] sm:$0xff]
  %v217 = vld [vmem:[%s1 + $0x50] sm:$0xff]
  %v218 = vld [vmem:[%s1 + $0x58] sm:$0xff]
  %v219 = vld [vmem:[%s1 + $0x60] sm:$0xff]
  %v220 = vld [vmem:[%s1 + $0x68] sm:$0xff]
  %v221 = vld [vmem:[%s1 + $0x70] sm:$0xff]
  %v222 = vld [vmem:[%s1 + $0x78] sm:$0xff]
  %v223 = vld [vmem:[%s1 + $0x80] sm:$0xff]
  %v224 = vld [vmem:[%s1 + $0x88] sm:$0xff]
  %v225 = vld [vmem:[%s1 + $0x90] sm:$0xff]
  %v226 = vld [vmem:[%s1 + $0x98] sm:$0xff]
  %v227 = vld [vmem:[%s1 + $0xa0] sm:$0xff]
  %v228 = vld [vmem:[%s1 + $0xa8] sm:$0xff]
  %v229 = vld [vmem:[%s1 + $0xb0] sm:$0xff]
  %v230 = vld [vmem:[%s1 + $0xb8] sm:$0xff]
  %v231 = vld [vmem:[%s1 + $0xc0] sm:$0xff]
  %v232 = vld [vmem:[%s1 + $0xc8] sm:$0xff]
  %v233 = vld [vmem:[%s1 + $0xd0] sm:$0xff]
  %v234 = vld [vmem:[%s1 + $0xd8] sm:$0xff]
  %v235 = vld [vmem:[%s1 + $0xe0] sm:$0xff]
  %v236 = vld [vmem:[%s1 + $0xe8] sm:$0xff]
  %v237 = vld [vmem:[%s1 + $0xf0] sm:$0xff]
  %v238 = vld [vmem:[%s1 + $0xf8] sm:$0xff]
  %v239 = vld [vmem:[%s1 + $0x100] sm:$0xff]
  %v240 = vld [vmem:[%s1 + $0x108] sm:$0xff]
  %v241 = vld [vmem:[%s1 + $0x110] sm:$0xff]
  %v242 = vld [vmem:[%s1 + $0x118] sm:$0xff]
  %v243 = vld [vmem:[%s1 + $0x120] sm:$0xff]
  %v244 = vld [vmem:[%s1 + $0x128] sm:$0xff]
  %v245 = vld [vmem:[%s1 + $0x130] sm:$0xff]
  %v246 = vld [vmem:[%s1 + $0x138] sm:$0xff]
  %v247 = vld [vmem:[%s1 + $0x140] sm:$0xff]
  %v248 = vld [vmem:[%s1 + $0x148] sm:$0xff]
  %v249 = vld [vmem:[%s1 + $0x150] sm:$0xff]
  %v250 = vld [vmem:[%s1 + $0x158] sm:$0xff]
  %v251 = vld [vmem:[%s1 + $0x160] sm:$0xff]
  %v252 = vld [vmem:[%s1 + $0x168] sm:$0xff]
  %v253 = vld [vmem:[%s1 + $0x170] sm:$0xff]
  %v254 = vld [vmem:[%s1 + $0x178] sm:$0xff]
  %v255 = vld [vmem:[%s1 + $0x180] sm:$0xff]
  %v256 = vld [vmem:[%s1 + $0x188] sm:$0xff]
  %v257 = vld [vmem:[%s1 + $0x190] sm:$0xff]
  %v258 = vld [vmem:[%s1 + $0x198] sm:$0xff]
  %v259 = vld [vmem:[%s1 + $0x1a0] sm:$0xff]
  %v260 = vld [vmem:[%s1 + $0x1a8] sm:$0xff]
  %v261 = vld [vmem:[%s1 + $0x1b0] sm:$0xff]
  %v262 = vld [vmem:[%s1 + $0x1b8] sm:$0xff]
  %v263 = vld [vmem:[%s1 + $0x1c0] sm:$0xff]
  %v264 = vld [vmem:[%s1 + $0x1c8] sm:$0xff]
  %v265 = vld [vmem:[%s1 + $0x1d0] sm:$0xff]
  %v266 = vld [vmem:[%s1 + $0x1d8] sm:$0xff]
  %v267 = vld [vmem:[%s1 + $0x1e0] sm:$0xff]
  %v268 = vld [vmem:[%s1 + $0x1e8] sm:$0xff]
  %v269 = vld [vmem:[%s1 + $0x1f0] sm:$0xff]
  %v270 = vld [vmem:[%s1 + $0x1f8] sm:$0xff]
  %v271 = vld [vmem:[%s1 + $0x200] sm:$0xff]
  %v272 = vld [vmem:[%s1 + $0x208] sm:$0xff]
  %v273 = vld [vmem:[%s1 + $0x210] sm:$0xff]
  %v274 = vld [vmem:[%s1 + $0x218] sm:$0xff]
  %v275 = vld [vmem:[%s1 + $0x220] sm:$0xff]
  %v276 = vld [vmem:[%s1 + $0x228] sm:$0xff]
  %v277 = vld [vmem:[%s1 + $0x230] sm:$0xff]
  %v278 = vld [vmem:[%s1 + $0x238] sm:$0xff]
  %v279 = vld [vmem:[%s1 + $0x240] sm:$0xff]
  %v280 = vld [vmem:[%s1 + $0x248] sm:$0xff]
  %v281 = vld [vmem:[%s1 + $0x250] sm:$0xff]
  %v282 = vld [vmem:[%s1 + $0x258] sm:$0xff]
  %v283 = vld [vmem:[%s1 + $0x260] sm:$0xff]
  %v284 = vld [vmem:[%s1 + $0x268] sm:$0xff]
  %v285 = vld [vmem:[%s1 + $0x270] sm:$0xff]
  %v286 = vld [vmem:[%s1 + $0x278] sm:$0xff]
  %v287 = vld [vmem:[%s1 + $0x280] sm:$0xff]
  %v288 = vld [vmem:[%s1 + $0x288] sm:$0xff]
  %v289 = vld [vmem:[%s1 + $0x290] sm:$0xff]
  %v290 = vld [vmem:[%s1 + $0x298] sm:$0xff]
  %v291 = vld [vmem:[%s1 + $0x2a0] sm:$0xff]
  %v292 = vld [vmem:[%s1 + $0x2a8] sm:$0xff]
  %v293 = vld [vmem:[%s1 + $0x2b0] sm:$0xff]
  %v294 = vld [vmem:[%s1 + $0x2b8] sm:$0xff]
  %v295 = vld [vmem:[%s1 + $0x2c0] sm:$0xff]
  %v296 = vld [vmem:[%s1 + $0x2c8] sm:$0xff]
  %v297 = vld [vmem:[%s1 + $0x2d0] sm:$0xff]
  %v298 = vld [vmem:[%s1 + $0x2d8] sm:$0xff]
  %v299 = vld [vmem:[%s1 + $0x2e0] sm:$0xff]
  %v300 = vld [vmem:[%s1 + $0x2e8] sm:$0xff]
  %v301 = vld [vmem:[%s1 + $0x2f0] sm:$0xff]
  %v302 = vld [vmem:[%s1 + $0x2f8] sm:$0xff]
  %v303 = vld [vmem:[%s1 + $0x300] sm:$0xff]
  %v304 = vld [vmem:[%s1 + $0x308] sm:$0xff]
  %v305 = vld [vmem:[%s1 + $0x310] sm:$0xff]
  %v306 = vld [vmem:[%s1 + $0x318] sm:$0xff]
  %v307 = vld [vmem:[%s1 + $0x320] sm:$0xff]
  %v308 = vld [vmem:[%s1 + $0x328] sm:$0xff]
  %v309 = vld [vmem:[%s1 + $0x330] sm:$0xff]
  %v310 = vld [vmem:[%s1 + $0x338] sm:$0xff]
  %v311 = vld [vmem:[%s1 + $0x340] sm:$0xff]
  %v312 = vld [vmem:[%s1 + $0x348] sm:$0xff]
  %v313 = vld [vmem:[%s1 + $0x350] sm:$0xff]
  %v314 = vld [vmem:[%s1 + $0x358] sm:$0xff]
  %v315 = vld [vmem:[%s1 + $0x360] sm:$0xff]
  %v316 = vld [vmem:[%s1 + $0x368] sm:$0xff]
  %v317 = vld [vmem:[%s1 + $0x370] sm:$0xff]
  %v318 = vld [vmem:[%s1 + $0x378] sm:$0xff]
  %v319 = vld [vmem:[%s1 + $0x380] sm:$0xff]
  %v320 = vld [vmem:[%s1 + $0x388] sm:$0xff]
  %v321 = vld [vmem:[%s1 + $0x390] sm:$0xff]
  %v322 = vld [vmem:[%s1 + $0x398] sm:$0xff]
  %v323 = vld [vmem:[%s1 + $0x3a0] sm:$0xff]
  %v324 = vld [vmem:[%s1 + $0x3a8] sm:$0xff]
  %v325 = vld [vmem:[%s1 + $0x3b0] sm:$0xff]
  %v326 = vld [vmem:[%s1 + $0x3b8] sm:$0xff]
  %v327 = vld [vmem:[%s1 + $0x3c0] sm:$0xff]
  %v328 = vld [vmem:[%s1 + $0x3c8] sm:$0xff]
  %v329 = vld [vmem:[%s1 + $0x3d0] sm:$0xff]
  %v330 = vld [vmem:[%s1 + $0x3d8] sm:$0xff]
  %v331 = vld [vmem:[%s1 + $0x3e0] sm:$0xff]
  %v332 = vld [vmem:[%s1 + $0x3e8] sm:$0xff]
  %v333 = vld [vmem:[%s1 + $0x3f0] sm:$0xff]
  %v334 = vld [vmem:[%s1 + $0x3f8] sm:$0xff]
  %v335 = vld [vmem:[%s1 + $0x400] sm:$0xff]
  %v336 = vld [vmem:[%s1 + $0x408] sm:$0xff]
  %v337 = vld [vmem:[%s1 + $0x410] sm:$0xff]
  %v338 = vld [vmem:[%s1 + $0x418] sm:$0xff]
  %v339 = vld [vmem:[%s1 + $0x420] sm:$0xff]
  %v340 = vld [vmem:[%s1 + $0x428] sm:$0xff]
  %v341 = vld [vmem:[%s1 + $0x430] sm:$0xff]
  %v342 = vld [vmem:[%s1 + $0x438] sm:$0xff]
  %v343 = vld [vmem:[%s1 + $0x440] sm:$0xff]
  %v344 = vld [vmem:[%s1 + $0x448] sm:$0xff]
  %v345 = vld [vmem:[%s1 + $0x450] sm:$0xff]
  %v346 = vld [vmem:[%s1 + $0x458] sm:$0xff]
  %v347 = vld [vmem:[%s1 + $0x460] sm:$0xff]
  %v348 = vld [vmem:[%s1 + $0x468] sm:$0xff]
  %v349 = vld [vmem:[%s1 + $0x470] sm:$0xff]
  %v350 = vld [vmem:[%s1 + $0x478] sm:$0xff]
  %v351 = vld [vmem:[%s1 + $0x480] sm:$0xff]
  %v352 = vld [vmem:[%s1 + $0x488] sm:$0xff]
  %v353 = vld [vmem:[%s1 + $0x490] sm:$0xff]
  %v354 = vld [vmem:[%s1 + $0x498] sm:$0xff]
  %v355 = vld [vmem:[%s1 + $0x4a0] sm:$0xff]
  %v356 = vld [vmem:[%s1 + $0x4a8] sm:$0xff]
  %v357 = vld [vmem:[%s1 + $0x4b0] sm:$0xff]
  %v358 = vld [vmem:[%s1 + $0x4b8] sm:$0xff]
  %v359 = vld [vmem:[%s1 + $0x4c0] sm:$0xff]
  %v360 = vld [vmem:[%s1 + $0x4c8] sm:$0xff]
  %v361 = vld [vmem:[%s1 + $0x4d0] sm:$0xff]
  %v362 = vld [vmem:[%s1 + $0x4d8] sm:$0xff]
  %v363 = vld [vmem:[%s1 + $0x4e0] sm:$0xff]
  %v364 = vld [vmem:[%s1 + $0x4e8] sm:$0xff]
  %v365 = vld [vmem:[%s1 + $0x4f0] sm:$0xff]
  %v366 = vld [vmem:[%s1 + $0x4f8] sm:$0xff]
  %v367 = vld [vmem:[%s1 + $0x500] sm:$0xff]
  %v368 = vld [vmem:[%s1 + $0x508] sm:$0xff]
  %v369 = vld [vmem:[%s1 + $0x510] sm:$0xff]
  %v370 = vld [vmem:[%s1 + $0x518] sm:$0xff]
  %v371 = vld [vmem:[%s1 + $0x520] sm:$0xff]
  %v372 = vld [vmem:[%s1 + $0x528] sm:$0xff]
  %v373 = vld [vmem:[%s1 + $0x530] sm:$0xff]
  %v374 = vld [vmem:[%s1 + $0x538] sm:$0xff]
  %v375 = vld [vmem:[%s1 + $0x540] sm:$0xff]
  %v376 = vld [vmem:[%s1 + $0x548] sm:$0xff]
  %v377 = vld [vmem:[%s1 + $0x550] sm:$0xff]
  %v378 = vld [vmem:[%s1 + $0x558] sm:$0xff]
  %v379 = vld [vmem:[%s1 + $0x560] sm:$0xff]
  %v380 = vld [vmem:[%s1 + $0x568] sm:$0xff]
  %v381 = vld [vmem:[%s1 + $0x570] sm:$0xff]
  %v382 = vld [vmem:[%s1 + $0x578] sm:$0xff]
  %v383 = vld [vmem:[%s1 + $0x580] sm:$0xff]
  %v384 = vld [vmem:[%s1 + $0x588] sm:$0xff]
  %v385 = vld [vmem:[%s1 + $0x590] sm:$0xff]
  %v386 = vld [vmem:[%s1 + $0x598] sm:$0xff]
  %v387 = vld [vmem:[%s1 + $0x5a0] sm:$0xff]
  %v388 = vld [vmem:[%s1 + $0x5a8] sm:$0xff]
  %v389 = vld [vmem:[%s1 + $0x5b0] sm:$0xff]
  %v390 = vld [vmem:[%s1 + $0x5b8] sm:$0xff]
  %v391 = vld [vmem:[%s1 + $0x5c0] sm:$0xff]
  %v392 = vld [vmem:[%s1 + $0x5c8] sm:$0xff]
  %v393 = vld [vmem:[%s1 + $0x5d0] sm:$0xff]
  %v394 = vld [vmem:[%s1 + $0x5d8] sm:$0xff]
  %v395 = vld [vmem:[%s1 + $0x5e0] sm:$0xff]
  %v396 = vld [vmem:[%s1 + $0x5e8] sm:$0xff]
  %v397 = vld [vmem:[%s1 + $0x5f0] sm:$0xff]
  %v398 = vld [vmem:[%s1 + $0x5f8] sm:$0xff]
  %v399 = vld [vmem:[%s1 + $0x600] sm:$0xff]
  %v400 = vld [vmem:[%s1 + $0x608] sm:$0xff]
  %v401 = vld [vmem:[%s1 + $0x610] sm:$0xff]
  %v402 = vld [vmem:[%s1 + $0x618] sm:$0xff]
  %v403 = vld [vmem:[%s1 + $0x620] sm:$0xff]
  %v404 = vld [vmem:[%s1 + $0x628] sm:$0xff]
  %v405 = vld [vmem:[%s1 + $0x630] sm:$0xff]
  %v406 = vld [vmem:[%s1 + $0x638] sm:$0xff]
  %v407 = vld [vmem:[%s1 + $0x640] sm:$0xff]
  %v408 = vld [vmem:[%s1 + $0x648] sm:$0xff]
  %v409 = vld [vmem:[%s1 + $0x650] sm:$0xff]
  %v410 = vld [vmem:[%s1 + $0x658] sm:$0xff]
  %v411 = vld [vmem:[%s1 + $0x660] sm:$0xff]
  %v412 = vld [vmem:[%s1 + $0x668] sm:$0xff]
  %v413 = vld [vmem:[%s1 + $0x670] sm:$0xff]
  %v414 = vld [vmem:[%s1 + $0x678] sm:$0xff]
  %v415 = vld [vmem:[%s1 + $0x680] sm:$0xff]
  %v416 = vld [vmem:[%s1 + $0x688] sm:$0xff]
  %v417 = vld [vmem:[%s1 + $0x690] sm:$0xff]
  %v418 = vld [vmem:[%s1 + $0x698] sm:$0xff]
  %v419 = vld [vmem:[%s1 + $0x6a0] sm:$0xff]
  %v420 = vld [vmem:[%s1 + $0x6a8] sm:$0xff]
  %v421 = vld [vmem:[%s1 + $0x6b0] sm:$0xff]
  %v422 = vld [vmem:[%s1 + $0x6b8] sm:$0xff]
  %v423 = vpack.c.bf16 %v209, %v207
  %v424 = vpack.c.bf16 %v210, %v208
  %v425 = vpack.c.bf16 %v213, %v211
  %v426 = vpack.c.bf16 %v214, %v212
  %v427 = vpack.c.bf16 %v217, %v215
  %v428 = vpack.c.bf16 %v218, %v216
  %v429 = vpack.c.bf16 %v221, %v219
  %v430 = vpack.c.bf16 %v222, %v220
  %v431 = vpack.c.bf16 %v225, %v223
  %v432 = vpack.c.bf16 %v226, %v224
  %v433 = vpack.c.bf16 %v229, %v227
  %v434 = vpack.c.bf16 %v230, %v228
  %v435 = vpack.c.bf16 %v233, %v231
  %v436 = vpack.c.bf16 %v234, %v232
  %v437 = vpack.c.bf16 %v237, %v235
  %v438 = vpack.c.bf16 %v238, %v236
  %v439 = vpack.c.bf16 %v241, %v239
  %v440 = vpack.c.bf16 %v242, %v240
  %v441 = vpack.c.bf16 %v245, %v243
  %v442 = vpack.c.bf16 %v246, %v244
  %v443 = vpack.c.bf16 %v249, %v247
  %v444 = vpack.c.bf16 %v250, %v248
  %v445 = vpack.c.bf16 %v253, %v251
  %v446 = vpack.c.bf16 %v254, %v252
  %v447 = vpack.c.bf16 %v257, %v255
  %v448 = vpack.c.bf16 %v258, %v256
  %v449 = vpack.c.bf16 %v261, %v259
  %v450 = vpack.c.bf16 %v262, %v260
  %v451 = vpack.c.bf16 %v265, %v263
  %v452 = vpack.c.bf16 %v266, %v264
  %v453 = vpack.c.bf16 %v269, %v267
  %v454 = vpack.c.bf16 %v270, %v268
  %v455 = vpack.c.bf16 %v273, %v271
  %v456 = vpack.c.bf16 %v274, %v272
  %v457 = vpack.c.bf16 %v277, %v275
  %v458 = vpack.c.bf16 %v278, %v276
  %v459 = vpack.c.bf16 %v281, %v279
  %v460 = vpack.c.bf16 %v282, %v280
  %v461 = vpack.c.bf16 %v285, %v283
  %v462 = vpack.c.bf16 %v286, %v284
  %v463 = vpack.c.bf16 %v289, %v287
  %v464 = vpack.c.bf16 %v290, %v288
  %v465 = vpack.c.bf16 %v293, %v291
  %v466 = vpack.c.bf16 %v294, %v292
  %v467 = vpack.c.bf16 %v297, %v295
  %v468 = vpack.c.bf16 %v298, %v296
  %v469 = vpack.c.bf16 %v301, %v299
  %v470 = vpack.c.bf16 %v302, %v300
  %v471 = vpack.c.bf16 %v305, %v303
  %v472 = vpack.c.bf16 %v306, %v304
  %v473 = vpack.c.bf16 %v309, %v307
  %v474 = vpack.c.bf16 %v310, %v308
  %v475 = vpack.c.bf16 %v313, %v311
  %v476 = vpack.c.bf16 %v314, %v312
  %v477 = vpack.c.bf16 %v317, %v315
  %v478 = vpack.c.bf16 %v318, %v316
  %v479 = vpack.c.bf16 %v321, %v319
  %v480 = vpack.c.bf16 %v322, %v320
  %v481 = vpack.c.bf16 %v325, %v323
  %v482 = vpack.c.bf16 %v326, %v324
  %v483 = vpack.c.bf16 %v329, %v327
  %v484 = vpack.c.bf16 %v330, %v328
  %v485 = vpack.c.bf16 %v333, %v331
  %v486 = vpack.c.bf16 %v334, %v332
  %v487 = vpack.c.bf16 %v337, %v335
  %v488 = vpack.c.bf16 %v338, %v336
  %v489 = vpack.c.bf16 %v341, %v339
  %v490 = vpack.c.bf16 %v342, %v340
  %v491 = vpack.c.bf16 %v345, %v343
  %v492 = vpack.c.bf16 %v346, %v344
  %v493 = vpack.c.bf16 %v349, %v347
  %v494 = vpack.c.bf16 %v350, %v348
  %v495 = vpack.c.bf16 %v353, %v351
  %v496 = vpack.c.bf16 %v354, %v352
  %v497 = vpack.c.bf16 %v357, %v355
  %v498 = vpack.c.bf16 %v358, %v356
  %v499 = vpack.c.bf16 %v361, %v359
  %v500 = vpack.c.bf16 %v362, %v360
  %v501 = vpack.c.bf16 %v365, %v363
  %v502 = vpack.c.bf16 %v366, %v364
  %v503 = vpack.c.bf16 %v369, %v367
  %v504 = vpack.c.bf16 %v370, %v368
  %v505 = vpack.c.bf16 %v373, %v371
  %v506 = vpack.c.bf16 %v374, %v372
  %v507 = vpack.c.bf16 %v377, %v375
  %v508 = vpack.c.bf16 %v378, %v376
  %v509 = vpack.c.bf16 %v381, %v379
  %v510 = vpack.c.bf16 %v382, %v380
  %v511 = vpack.c.bf16 %v385, %v383
  %v512 = vpack.c.bf16 %v386, %v384
  %v513 = vpack.c.bf16 %v389, %v387
  %v514 = vpack.c.bf16 %v390, %v388
  %v515 = vpack.c.bf16 %v393, %v391
  %v516 = vpack.c.bf16 %v394, %v392
  %v517 = vpack.c.bf16 %v397, %v395
  %v518 = vpack.c.bf16 %v398, %v396
  %v519 = vpack.c.bf16 %v401, %v399
  %v520 = vpack.c.bf16 %v402, %v400
  %v521 = vpack.c.bf16 %v405, %v403
  %v522 = vpack.c.bf16 %v406, %v404
  %v523 = vpack.c.bf16 %v409, %v407
  %v524 = vpack.c.bf16 %v410, %v408
  %v525 = vpack.c.bf16 %v413, %v411
  %v526 = vpack.c.bf16 %v414, %v412
  %v527 = vpack.c.bf16 %v417, %v415
  %v528 = vpack.c.bf16 %v418, %v416
  %v529 = vpack.c.bf16 %v421, %v419
  %v530 = vpack.c.bf16 %v422, %v420
  %vm531 = vcmask 785408
  %v533 = vsel %vm531, %v150, 0
  %v536 = vsel %vm531, %v157, 0
  %v539 = vsel %vm531, %v164, 0
  %v542 = vsel %vm531, %v171, 0
  %v545 = vsel %vm531, %v178, 0
  %v548 = vsel %vm531, %v185, 0
  %v551 = vsel %vm531, %v192, 0
  %v554 = vsel %vm531, %v199, 0
  %v557 = vsel %vm531, %v206, 0
  %559 = vmatprep.subr.bf16.mxu0 %v424
  %560 = vmatpush1.bf16.msra.mxu0 %v423
  %561 = vmatprep.subr.bf16.mxu0 %v426
  %562 = vmatpush1.bf16.msra.mxu0 %v425
  %563 = vmatprep.subr.bf16.mxu0 %v428
  %564 = vmatpush1.bf16.msra.mxu0 %v427
  %565 = vmatprep.subr.bf16.mxu0 %v430
  %566 = vmatpush1.bf16.msra.mxu0 %v429
  %567 = vmatprep.subr.bf16.mxu0 %v432
  %568 = vmatpush1.bf16.msra.mxu0 %v431
  %569 = vmatprep.subr.bf16.mxu0 %v434
  %570 = vmatpush1.bf16.msra.mxu0 %v433
  %571 = vmatprep.subr.bf16.mxu0 %v436
  %572 = vmatpush1.bf16.msra.mxu0 %v435
  %573 = vmatprep.subr.bf16.mxu0 %v438
  %574 = vmatpush1.bf16.msra.mxu0 %v437
  %575 = vmatprep.subr.bf16.mxu0 %v440
  %576 = vmatpush1.bf16.msra.mxu0 %v439
  %577 = vmatprep.subr.bf16.mxu0 %v442
  %578 = vmatpush1.bf16.msra.mxu0 %v441
  %579 = vmatprep.subr.bf16.mxu0 %v444
  %580 = vmatpush1.bf16.msra.mxu0 %v443
  %581 = vmatprep.subr.bf16.mxu0 %v446
  %582 = vmatpush1.bf16.msra.mxu0 %v445
  %583 = vmatprep.subr.bf16.mxu0 %v448
  %584 = vmatpush1.bf16.msra.mxu0 %v447
  %585 = vmatprep.subr.bf16.mxu0 %v450
  %586 = vmatpush1.bf16.msra.mxu0 %v449
  %587 = vmatprep.subr.bf16.mxu0 %v452
  %588 = vmatpush1.bf16.msra.mxu0 %v451
  %589 = vmatprep.subr.bf16.mxu0 %v454
  %590 = vmatpush1.bf16.msra.mxu0 %v453
  %591 = vmatprep.mubr.bf16.mxu0 %v145
  %592 = vmatmul.mubr.bf16.gmra.mrb[0].mxu0 %v144
  %v593 = vpop.f32.mrb[0].mxu0
  %v594 = vadd.f32 0.0, %v593
  %v595 = vpop.f32.mrb[0].mxu0
  %v596 = vadd.f32 0.0, %v595
  %v597 = vpop.f32.mrb[0].mxu0
  %v598 = vadd.f32 0.0, %v597
  %v599 = vpop.f32.mrb[0].mxu0
  %v600 = vadd.f32 0.0, %v599
  %601 = vmatprep.mubr.bf16.mxu0 %v152
  %602 = vmatmul.mubr.bf16.gmra.mrb[0].mxu0 %v151
  %v603 = vpop.f32.mrb[0].mxu0
  %v604 = vadd.f32 0.0, %v603
  %v605 = vpop.f32.mrb[0].mxu0
  %v606 = vadd.f32 0.0, %v605
  %v607 = vpop.f32.mrb[0].mxu0
  %v608 = vadd.f32 0.0, %v607
  %v609 = vpop.f32.mrb[0].mxu0
  %v610 = vadd.f32 0.0, %v609
  %611 = vmatprep.mubr.bf16.mxu0 %v159
  %612 = vmatmul.mubr.bf16.gmra.mrb[0].mxu0 %v158
  %v613 = vpop.f32.mrb[0].mxu0
  %v614 = vadd.f32 0.0, %v613
  %v615 = vpop.f32.mrb[0].mxu0
  %v616 = vadd.f32 0.0, %v615
  %v617 = vpop.f32.mrb[0].mxu0
  %v618 = vadd.f32 0.0, %v617
  %v619 = vpop.f32.mrb[0].mxu0
  %v620 = vadd.f32 0.0, %v619
  %621 = vmatprep.mubr.bf16.mxu0 %v166
  %622 = vmatmul.mubr.bf16.gmra.mrb[0].mxu0 %v165
  %v623 = vpop.f32.mrb[0].mxu0
  %v624 = vadd.f32 0.0, %v623
  %v625 = vpop.f32.mrb[0].mxu0
  %v626 = vadd.f32 0.0, %v625
  %v627 = vpop.f32.mrb[0].mxu0
  %v628 = vadd.f32 0.0, %v627
  %v629 = vpop.f32.mrb[0].mxu0
  %v630 = vadd.f32 0.0, %v629
  %631 = vmatprep.mubr.bf16.mxu0 %v173
  %632 = vmatmul.mubr.bf16.gmra.mrb[0].mxu0 %v172
  %v633 = vpop.f32.mrb[0].mxu0
  %v634 = vadd.f32 0.0, %v633
  %v635 = vpop.f32.mrb[0].mxu0
  %v636 = vadd.f32 0.0, %v635
  %v637 = vpop.f32.mrb[0].mxu0
  %v638 = vadd.f32 0.0, %v637
  %v639 = vpop.f32.mrb[0].mxu0
  %v640 = vadd.f32 0.0, %v639
  %641 = vmatprep.mubr.bf16.mxu0 %v180
  %642 = vmatmul.mubr.bf16.gmra.mrb[0].mxu0 %v179
  %v643 = vpop.f32.mrb[0].mxu0
  %v644 = vadd.f32 0.0, %v643
  %v645 = vpop.f32.mrb[0].mxu0
  %v646 = vadd.f32 0.0, %v645
  %v647 = vpop.f32.mrb[0].mxu0
  %v648 = vadd.f32 0.0, %v647
  %v649 = vpop.f32.mrb[0].mxu0
  %v650 = vadd.f32 0.0, %v649
  %651 = vmatprep.mubr.bf16.mxu0 %v187
  %652 = vmatmul.mubr.bf16.gmra.mrb[0].mxu0 %v186
  %v653 = vpop.f32.mrb[0].mxu0
  %v654 = vadd.f32 0.0, %v653
  %v655 = vpop.f32.mrb[0].mxu0
  %v656 = vadd.f32 0.0, %v655
  %v657 = vpop.f32.mrb[0].mxu0
  %v658 = vadd.f32 0.0, %v657
  %v659 = vpop.f32.mrb[0].mxu0
  %v660 = vadd.f32 0.0, %v659
  %661 = vmatprep.mubr.bf16.mxu0 %v194
  %662 = vmatmul.mubr.bf16.gmra.mrb[0].mxu0 %v193
  %v663 = vpop.f32.mrb[0].mxu0
  %v664 = vadd.f32 0.0, %v663
  %v665 = vpop.f32.mrb[0].mxu0
  %v666 = vadd.f32 0.0, %v665
  %v667 = vpop.f32.mrb[0].mxu0
  %v668 = vadd.f32 0.0, %v667
  %v669 = vpop.f32.mrb[0].mxu0
  %v670 = vadd.f32 0.0, %v669
  %671 = vmatprep.mubr.bf16.mxu0 %v201
  %672 = vmatmul.mubr.bf16.gmra.mrb[0].mxu0 %v200
  %v673 = vpop.f32.mrb[0].mxu0
  %v674 = vadd.f32 0.0, %v673
  %v675 = vpop.f32.mrb[0].mxu0
  %v676 = vadd.f32 0.0, %v675
  %v677 = vpop.f32.mrb[0].mxu0
  %v678 = vadd.f32 0.0, %v677
  %v679 = vpop.f32.mrb[0].mxu0
  %v680 = vadd.f32 0.0, %v679
  %681 = vdwg.mxu0
  %682 = vmatprep.subr.bf16.mxu0 %v456
  %683 = vmatpush1.bf16.msra.mxu0 %v455
  %684 = vmatprep.subr.bf16.mxu0 %v458
  %685 = vmatpush1.bf16.msra.mxu0 %v457
  %686 = vmatprep.subr.bf16.mxu0 %v460
  %687 = vmatpush1.bf16.msra.mxu0 %v459
  %688 = vmatprep.subr.bf16.mxu0 %v462
  %689 = vmatpush1.bf16.msra.mxu0 %v461
  %690 = vmatprep.subr.bf16.mxu0 %v464
  %691 = vmatpush1.bf16.msra.mxu0 %v463
  %692 = vmatprep.subr.bf16.mxu0 %v466
  %693 = vmatpush1.bf16.msra.mxu0 %v465
  %694 = vmatprep.subr.bf16.mxu0 %v468
  %695 = vmatpush1.bf16.msra.mxu0 %v467
  %696 = vmatprep.subr.bf16.mxu0 %v470
  %697 = vmatpush1.bf16.msra.mxu0 %v469
  %698 = vmatprep.subr.bf16.mxu0 %v472
  %699 = vmatpush1.bf16.msra.mxu0 %v471
  %700 = vmatprep.subr.bf16.mxu0 %v474
  %701 = vmatpush1.bf16.msra.mxu0 %v473
  %702 = vmatprep.subr.bf16.mxu0 %v476
  %703 = vmatpush1.bf16.msra.mxu0 %v475
  %704 = vmatprep.subr.bf16.mxu0 %v478
  %705 = vmatpush1.bf16.msra.mxu0 %v477
  %706 = vmatprep.subr.bf16.mxu0 %v480
  %707 = vmatpush1.bf16.msra.mxu0 %v479
  %708 = vmatprep.subr.bf16.mxu0 %v482
  %709 = vmatpush1.bf16.msra.mxu0 %v481
  %710 = vmatprep.subr.bf16.mxu0 %v484
  %711 = vmatpush1.bf16.msra.mxu0 %v483
  %712 = vmatprep.subr.bf16.mxu0 %v486
  %713 = vmatpush1.bf16.msra.mxu0 %v485
  %714 = vmatprep.mubr.bf16.mxu0 %v147
  %715 = vmatmul.mubr.bf16.gmra.mrb[0].mxu0 %v146
  %v716 = vpop.f32.mrb[0].mxu0
  %v717 = vadd.f32 %v594, %v716
  %v718 = vpop.f32.mrb[0].mxu0
  %v719 = vadd.f32 %v596, %v718
  %v720 = vpop.f32.mrb[0].mxu0
  %v721 = vadd.f32 %v598, %v720
  %v722 = vpop.f32.mrb[0].mxu0
  %v723 = vadd.f32 %v600, %v722
  %724 = vmatprep.mubr.bf16.mxu0 %v154
  %725 = vmatmul.mubr.bf16.gmra.mrb[0].mxu0 %v153
  %v726 = vpop.f32.mrb[0].mxu0
  %v727 = vadd.f32 %v604, %v726
  %v728 = vpop.f32.mrb[0].mxu0
  %v729 = vadd.f32 %v606, %v728
  %v730 = vpop.f32.mrb[0].mxu0
  %v731 = vadd.f32 %v608, %v730
  %v732 = vpop.f32.mrb[0].mxu0
  %v733 = vadd.f32 %v610, %v732
  %734 = vmatprep.mubr.bf16.mxu0 %v161
  %735 = vmatmul.mubr.bf16.gmra.mrb[0].mxu0 %v160
  %v736 = vpop.f32.mrb[0].mxu0
  %v737 = vadd.f32 %v614, %v736
  %v738 = vpop.f32.mrb[0].mxu0
  %v739 = vadd.f32 %v616, %v738
  %v740 = vpop.f32.mrb[0].mxu0
  %v741 = vadd.f32 %v618, %v740
  %v742 = vpop.f32.mrb[0].mxu0
  %v743 = vadd.f32 %v620, %v742
  %744 = vmatprep.mubr.bf16.mxu0 %v168
  %745 = vmatmul.mubr.bf16.gmra.mrb[0].mxu0 %v167
  %v746 = vpop.f32.mrb[0].mxu0
  %v747 = vadd.f32 %v624, %v746
  %v748 = vpop.f32.mrb[0].mxu0
  %v749 = vadd.f32 %v626, %v748
  %v750 = vpop.f32.mrb[0].mxu0
  %v751 = vadd.f32 %v628, %v750
  %v752 = vpop.f32.mrb[0].mxu0
  %v753 = vadd.f32 %v630, %v752
  %754 = vmatprep.mubr.bf16.mxu0 %v175
  %755 = vmatmul.mubr.bf16.gmra.mrb[0].mxu0 %v174
  %v756 = vpop.f32.mrb[0].mxu0
  %v757 = vadd.f32 %v634, %v756
  %v758 = vpop.f32.mrb[0].mxu0
  %v759 = vadd.f32 %v636, %v758
  %v760 = vpop.f32.mrb[0].mxu0
  %v761 = vadd.f32 %v638, %v760
  %v762 = vpop.f32.mrb[0].mxu0
  %v763 = vadd.f32 %v640, %v762
  %764 = vmatprep.mubr.bf16.mxu0 %v182
  %765 = vmatmul.mubr.bf16.gmra.mrb[0].mxu0 %v181
  %v766 = vpop.f32.mrb[0].mxu0
  %v767 = vadd.f32 %v644, %v766
  %v768 = vpop.f32.mrb[0].mxu0
  %v769 = vadd.f32 %v646, %v768
  %v770 = vpop.f32.mrb[0].mxu0
  %v771 = vadd.f32 %v648, %v770
  %v772 = vpop.f32.mrb[0].mxu0
  %v773 = vadd.f32 %v650, %v772
  %774 = vmatprep.mubr.bf16.mxu0 %v189
  %775 = vmatmul.mubr.bf16.gmra.mrb[0].mxu0 %v188
  %v776 = vpop.f32.mrb[0].mxu0
  %v777 = vadd.f32 %v654, %v776
  %v778 = vpop.f32.mrb[0].mxu0
  %v779 = vadd.f32 %v656, %v778
  %v780 = vpop.f32.mrb[0].mxu0
  %v781 = vadd.f32 %v658, %v780
  %v782 = vpop.f32.mrb[0].mxu0
  %v783 = vadd.f32 %v660, %v782
  %784 = vmatprep.mubr.bf16.mxu0 %v196
  %785 = vmatmul.mubr.bf16.gmra.mrb[0].mxu0 %v195
  %v786 = vpop.f32.mrb[0].mxu0
  %v787 = vadd.f32 %v664, %v786
  %v788 = vpop.f32.mrb[0].mxu0
  %v789 = vadd.f32 %v666, %v788
  %v790 = vpop.f32.mrb[0].mxu0
  %v791 = vadd.f32 %v668, %v790
  %v792 = vpop.f32.mrb[0].mxu0
  %v793 = vadd.f32 %v670, %v792
  %794 = vmatprep.mubr.bf16.mxu0 %v203
  %795 = vmatmul.mubr.bf16.gmra.mrb[0].mxu0 %v202
  %v796 = vpop.f32.mrb[0].mxu0
  %v797 = vadd.f32 %v674, %v796
  %v798 = vpop.f32.mrb[0].mxu0
  %v799 = vadd.f32 %v676, %v798
  %v800 = vpop.f32.mrb[0].mxu0
  %v801 = vadd.f32 %v678, %v800
  %v802 = vpop.f32.mrb[0].mxu0
  %v803 = vadd.f32 %v680, %v802
  %804 = vdwg.mxu0
  %805 = vmatprep.subr.bf16.mxu0 %v488
  %806 = vmatpush1.bf16.msra.mxu0 %v487
  %807 = vmatprep.subr.bf16.mxu0 %v490
  %808 = vmatpush1.bf16.msra.mxu0 %v489
  %809 = vmatprep.subr.bf16.mxu0 %v492
  %810 = vmatpush1.bf16.msra.mxu0 %v491
  %811 = vmatprep.subr.bf16.mxu0 %v494
  %812 = vmatpush1.bf16.msra.mxu0 %v493
  %813 = vmatprep.subr.bf16.mxu0 %v496
  %814 = vmatpush1.bf16.msra.mxu0 %v495
  %815 = vmatprep.subr.bf16.mxu0 %v498
  %816 = vmatpush1.bf16.msra.mxu0 %v497
  %817 = vmatprep.subr.bf16.mxu0 %v500
  %818 = vmatpush1.bf16.msra.mxu0 %v499
  %819 = vmatprep.subr.bf16.mxu0 %v502
  %820 = vmatpush1.bf16.msra.mxu0 %v501
  %821 = vmatprep.subr.bf16.mxu0 %v504
  %822 = vmatpush1.bf16.msra.mxu0 %v503
  %823 = vmatprep.subr.bf16.mxu0 %v506
  %824 = vmatpush1.bf16.msra.mxu0 %v505
  %825 = vmatprep.subr.bf16.mxu0 %v508
  %826 = vmatpush1.bf16.msra.mxu0 %v507
  %827 = vmatprep.subr.bf16.mxu0 %v510
  %828 = vmatpush1.bf16.msra.mxu0 %v509
  %829 = vmatprep.subr.bf16.mxu0 %v512
  %830 = vmatpush1.bf16.msra.mxu0 %v511
  %831 = vmatprep.subr.bf16.mxu0 %v514
  %832 = vmatpush1.bf16.msra.mxu0 %v513
  %833 = vmatprep.subr.bf16.mxu0 %v516
  %834 = vmatpush1.bf16.msra.mxu0 %v515
  %835 = vmatprep.subr.bf16.mxu0 %v518
  %836 = vmatpush1.bf16.msra.mxu0 %v517
  %837 = vmatprep.mubr.bf16.mxu0 %v149
  %838 = vmatmul.mubr.bf16.gmra.mrb[0].mxu0 %v148
  %v839 = vpop.f32.mrb[0].mxu0
  %v840 = vadd.f32 %v717, %v839
  %v841 = vpop.f32.mrb[0].mxu0
  %v842 = vadd.f32 %v719, %v841
  %v843 = vpop.f32.mrb[0].mxu0
  %v844 = vadd.f32 %v721, %v843
  %v845 = vpop.f32.mrb[0].mxu0
  %v846 = vadd.f32 %v723, %v845
  %847 = vmatprep.mubr.bf16.mxu0 %v156
  %848 = vmatmul.mubr.bf16.gmra.mrb[0].mxu0 %v155
  %v849 = vpop.f32.mrb[0].mxu0
  %v850 = vadd.f32 %v727, %v849
  %v851 = vpop.f32.mrb[0].mxu0
  %v852 = vadd.f32 %v729, %v851
  %v853 = vpop.f32.mrb[0].mxu0
  %v854 = vadd.f32 %v731, %v853
  %v855 = vpop.f32.mrb[0].mxu0
  %v856 = vadd.f32 %v733, %v855
  %857 = vmatprep.mubr.bf16.mxu0 %v163
  %858 = vmatmul.mubr.bf16.gmra.mrb[0].mxu0 %v162
  %v859 = vpop.f32.mrb[0].mxu0
  %v860 = vadd.f32 %v737, %v859
  %v861 = vpop.f32.mrb[0].mxu0
  %v862 = vadd.f32 %v739, %v861
  %v863 = vpop.f32.mrb[0].mxu0
  %v864 = vadd.f32 %v741, %v863
  %v865 = vpop.f32.mrb[0].mxu0
  %v866 = vadd.f32 %v743, %v865
  %867 = vmatprep.mubr.bf16.mxu0 %v170
  %868 = vmatmul.mubr.bf16.gmra.mrb[0].mxu0 %v169
  %v869 = vpop.f32.mrb[0].mxu0
  %v870 = vadd.f32 %v747, %v869
  %v871 = vpop.f32.mrb[0].mxu0
  %v872 = vadd.f32 %v749, %v871
  %v873 = vpop.f32.mrb[0].mxu0
  %v874 = vadd.f32 %v751, %v873
  %v875 = vpop.f32.mrb[0].mxu0
  %v876 = vadd.f32 %v753, %v875
  %877 = vmatprep.mubr.bf16.mxu0 %v177
  %878 = vmatmul.mubr.bf16.gmra.mrb[0].mxu0 %v176
  %v879 = vpop.f32.mrb[0].mxu0
  %v880 = vadd.f32 %v757, %v879
  %v881 = vpop.f32.mrb[0].mxu0
  %v882 = vadd.f32 %v759, %v881
  %v883 = vpop.f32.mrb[0].mxu0
  %v884 = vadd.f32 %v761, %v883
  %v885 = vpop.f32.mrb[0].mxu0
  %v886 = vadd.f32 %v763, %v885
  %887 = vmatprep.mubr.bf16.mxu0 %v184
  %888 = vmatmul.mubr.bf16.gmra.mrb[0].mxu0 %v183
  %v889 = vpop.f32.mrb[0].mxu0
  %v890 = vadd.f32 %v767, %v889
  %v891 = vpop.f32.mrb[0].mxu0
  %v892 = vadd.f32 %v769, %v891
  %v893 = vpop.f32.mrb[0].mxu0
  %v894 = vadd.f32 %v771, %v893
  %v895 = vpop.f32.mrb[0].mxu0
  %v896 = vadd.f32 %v773, %v895
  %897 = vmatprep.mubr.bf16.mxu0 %v191
  %898 = vmatmul.mubr.bf16.gmra.mrb[0].mxu0 %v190
  %v899 = vpop.f32.mrb[0].mxu0
  %v900 = vadd.f32 %v777, %v899
  %v901 = vpop.f32.mrb[0].mxu0
  %v902 = vadd.f32 %v779, %v901
  %v903 = vpop.f32.mrb[0].mxu0
  %v904 = vadd.f32 %v781, %v903
  %v905 = vpop.f32.mrb[0].mxu0
  %v906 = vadd.f32 %v783, %v905
  %907 = vmatprep.mubr.bf16.mxu0 %v198
  %908 = vmatmul.mubr.bf16.gmra.mrb[0].mxu0 %v197
  %v909 = vpop.f32.mrb[0].mxu0
  %v910 = vadd.f32 %v787, %v909
  %v911 = vpop.f32.mrb[0].mxu0
  %v912 = vadd.f32 %v789, %v911
  %v913 = vpop.f32.mrb[0].mxu0
  %v914 = vadd.f32 %v791, %v913
  %v915 = vpop.f32.mrb[0].mxu0
  %v916 = vadd.f32 %v793, %v915
  %917 = vmatprep.mubr.bf16.mxu0 %v205
  %918 = vmatmul.mubr.bf16.gmra.mrb[0].mxu0 %v204
  %v919 = vpop.f32.mrb[0].mxu0
  %v920 = vadd.f32 %v797, %v919
  %v921 = vpop.f32.mrb[0].mxu0
  %v922 = vadd.f32 %v799, %v921
  %v923 = vpop.f32.mrb[0].mxu0
  %v924 = vadd.f32 %v801, %v923
  %v925 = vpop.f32.mrb[0].mxu0
  %v926 = vadd.f32 %v803, %v925
  %927 = vdwg.mxu0
  %928 = vmatprep.subr.bf16.mxu0 %v520
  %929 = vmatpush1.bf16.msra.mxu0 %v519
  %930 = vmatprep.subr.bf16.mxu0 %v522
  %931 = vmatpush1.bf16.msra.mxu0 %v521
  %932 = vmatprep.subr.bf16.mxu0 %v524
  %933 = vmatpush1.bf16.msra.mxu0 %v523
  %934 = vmatprep.subr.bf16.mxu0 %v526
  %935 = vmatpush1.bf16.msra.mxu0 %v525
  %936 = vmatprep.subr.bf16.mxu0 %v528
  %937 = vmatpush1.bf16.msra.mxu0 %v527
  %938 = vmatprep.subr.bf16.mxu0 %v530
  %939 = vmatpush1.bf16.msra.mxu0 %v529
  %940 = vmatprep.subr.bf16.mxu0 0
  %941 = vmatpush1.bf16.msra.mxu0 0
  %942 = vmatprep.subr.bf16.mxu0 0
  %943 = vmatpush1.bf16.msra.mxu0 0
  %944 = vmatprep.subr.bf16.mxu0 0
  %945 = vmatpush1.bf16.msra.mxu0 0
  %946 = vmatprep.subr.bf16.mxu0 0
  %947 = vmatpush1.bf16.msra.mxu0 0
  %948 = vmatprep.subr.bf16.mxu0 0
  %949 = vmatpush1.bf16.msra.mxu0 0
  %950 = vmatprep.subr.bf16.mxu0 0
  %951 = vmatpush1.bf16.msra.mxu0 0
  %952 = vmatprep.subr.bf16.mxu0 0
  %953 = vmatpush1.bf16.msra.mxu0 0
  %954 = vmatprep.subr.bf16.mxu0 0
  %955 = vmatpush1.bf16.msra.mxu0 0
  %956 = vmatprep.subr.bf16.mxu0 0
  %957 = vmatpush1.bf16.msra.mxu0 0
  %958 = vmatprep.subr.bf16.mxu0 0
  %959 = vmatpush1.bf16.msra.mxu0 0
  %960 = vmatprep.mubr.bf16.mxu0 0
  %961 = vmatmul.mubr.bf16.gmra.mrb[0].mxu0 %v533
  %v962 = vpop.f32.mrb[0].mxu0
  %v963 = vadd.f32 %v840, %v962
  %v964 = vpop.f32.mrb[0].mxu0
  %v965 = vadd.f32 %v842, %v964
  %v966 = vpop.f32.mrb[0].mxu0
  %v967 = vadd.f32 %v844, %v966
  %v968 = vpop.f32.mrb[0].mxu0
  %v969 = vadd.f32 %v846, %v968
  %970 = vmatprep.mubr.bf16.mxu0 0
  %971 = vmatmul.mubr.bf16.gmra.mrb[0].mxu0 %v536
  %v972 = vpop.f32.mrb[0].mxu0
  %v973 = vadd.f32 %v850, %v972
  %v974 = vpop.f32.mrb[0].mxu0
  %v975 = vadd.f32 %v852, %v974
  %v976 = vpop.f32.mrb[0].mxu0
  %v977 = vadd.f32 %v854, %v976
  %v978 = vpop.f32.mrb[0].mxu0
  %v979 = vadd.f32 %v856, %v978
  %980 = vmatprep.mubr.bf16.mxu0 0
  %981 = vmatmul.mubr.bf16.gmra.mrb[0].mxu0 %v539
  %v982 = vpop.f32.mrb[0].mxu0
  %v983 = vadd.f32 %v860, %v982
  %v984 = vpop.f32.mrb[0].mxu0
  %v985 = vadd.f32 %v862, %v984
  %v986 = vpop.f32.mrb[0].mxu0
  %v987 = vadd.f32 %v864, %v986
  %v988 = vpop.f32.mrb[0].mxu0
  %v989 = vadd.f32 %v866, %v988
  %990 = vmatprep.mubr.bf16.mxu0 0
  %991 = vmatmul.mubr.bf16.gmra.mrb[0].mxu0 %v542
  %v992 = vpop.f32.mrb[0].mxu0
  %v993 = vadd.f32 %v870, %v992
  %v994 = vpop.f32.mrb[0].mxu0
  %v995 = vadd.f32 %v872, %v994
  %v996 = vpop.f32.mrb[0].mxu0
  %v997 = vadd.f32 %v874, %v996
  %v998 = vpop.f32.mrb[0].mxu0
  %v999 = vadd.f32 %v876, %v998
  %1000 = vmatprep.mubr.bf16.mxu0 0
  %1001 = vmatmul.mubr.bf16.gmra.mrb[0].mxu0 %v545
  %v1002 = vpop.f32.mrb[0].mxu0
  %v1003 = vadd.f32 %v880, %v1002
  %v1004 = vpop.f32.mrb[0].mxu0
  %v1005 = vadd.f32 %v882, %v1004
  %v1006 = vpop.f32.mrb[0].mxu0
  %v1007 = vadd.f32 %v884, %v1006
  %v1008 = vpop.f32.mrb[0].mxu0
  %v1009 = vadd.f32 %v886, %v1008
  %1010 = vmatprep.mubr.bf16.mxu0 0
  %1011 = vmatmul.mubr.bf16.gmra.mrb[0].mxu0 %v548
  %v1012 = vpop.f32.mrb[0].mxu0
  %v1013 = vadd.f32 %v890, %v1012
  %v1014 = vpop.f32.mrb[0].mxu0
  %v1015 = vadd.f32 %v892, %v1014
  %v1016 = vpop.f32.mrb[0].mxu0
  %v1017 = vadd.f32 %v894, %v1016
  %v1018 = vpop.f32.mrb[0].mxu0
  %v1019 = vadd.f32 %v896, %v1018
  %1020 = vmatprep.mubr.bf16.mxu0 0
  %1021 = vmatmul.mubr.bf16.gmra.mrb[0].mxu0 %v551
  %v1022 = vpop.f32.mrb[0].mxu0
  %v1023 = vadd.f32 %v900, %v1022
  %v1024 = vpop.f32.mrb[0].mxu0
  %v1025 = vadd.f32 %v902, %v1024
  %v1026 = vpop.f32.mrb[0].mxu0
  %v1027 = vadd.f32 %v904, %v1026
  %v1028 = vpop.f32.mrb[0].mxu0
  %v1029 = vadd.f32 %v906, %v1028
  %1030 = vmatprep.mubr.bf16.mxu0 0
  %1031 = vmatmul.mubr.bf16.gmra.mrb[0].mxu0 %v554
  %v1032 = vpop.f32.mrb[0].mxu0
  %v1033 = vadd.f32 %v910, %v1032
  %v1034 = vpop.f32.mrb[0].mxu0
  %v1035 = vadd.f32 %v912, %v1034
  %v1036 = vpop.f32.mrb[0].mxu0
  %v1037 = vadd.f32 %v914, %v1036
  %v1038 = vpop.f32.mrb[0].mxu0
  %v1039 = vadd.f32 %v916, %v1038
  %1040 = vmatprep.mubr.bf16.mxu0 0
  %1041 = vmatmul.mubr.bf16.gmra.mrb[0].mxu0 %v557
  %v1042 = vpop.f32.mrb[0].mxu0
  %v1043 = vadd.f32 %v920, %v1042
  %v1044 = vpop.f32.mrb[0].mxu0
  %v1045 = vadd.f32 %v922, %v1044
  %v1046 = vpop.f32.mrb[0].mxu0
  %v1047 = vadd.f32 %v924, %v1046
  %v1048 = vpop.f32.mrb[0].mxu0
  %v1049 = vadd.f32 %v926, %v1048
  %1050 = vdwg.mxu0
  %vm1051 = vcmask 556032
  %v1052 = vsel %vm1051, %v965, 0.0
  %v1053 = vadd.f32 %v963, %v1052
  %1054 = vadd.xlane.f32.xlu0 %v1053
  %v1055 = vpop.xlane.xlu0 %1054
  %v1056 = vsel %vm1051, %v969, 0.0
  %v1057 = vadd.f32 %v967, %v1056
  %1058 = vadd.xlane.f32.xlu0 %v1057
  %v1059 = vpop.xlane.xlu0 %1058
  %v1060 = vsel %vm1051, %v975, 0.0
  %v1061 = vadd.f32 %v973, %v1060
  %1062 = vadd.xlane.f32.xlu0 %v1061
  %v1063 = vpop.xlane.xlu0 %1062
  %v1064 = vsel %vm1051, %v979, 0.0
  %v1065 = vadd.f32 %v977, %v1064
  %1066 = vadd.xlane.f32.xlu0 %v1065
  %v1067 = vpop.xlane.xlu0 %1066
  %v1068 = vsel %vm1051, %v985, 0.0
  %v1069 = vadd.f32 %v983, %v1068
  %1070 = vadd.xlane.f32.xlu0 %v1069
  %v1071 = vpop.xlane.xlu0 %1070
  %v1072 = vsel %vm1051, %v989, 0.0
  %v1073 = vadd.f32 %v987, %v1072
  %1074 = vadd.xlane.f32.xlu0 %v1073
  %v1075 = vpop.xlane.xlu0 %1074
  %v1076 = vsel %vm1051, %v995, 0.0
  %v1077 = vadd.f32 %v993, %v1076
  %1078 = vadd.xlane.f32.xlu0 %v1077
  %v1079 = vpop.xlane.xlu0 %1078
  %v1080 = vsel %vm1051, %v999, 0.0
  %v1081 = vadd.f32 %v997, %v1080
  %1082 = vadd.xlane.f32.xlu0 %v1081
  %v1083 = vpop.xlane.xlu0 %1082
  %v1084 = vsel %vm1051, %v1005, 0.0
  %v1085 = vadd.f32 %v1003, %v1084
  %1086 = vadd.xlane.f32.xlu0 %v1085
  %v1087 = vpop.xlane.xlu0 %1086
  %v1088 = vsel %vm1051, %v1009, 0.0
  %v1089 = vadd.f32 %v1007, %v1088
  %1090 = vadd.xlane.f32.xlu0 %v1089
  %v1091 = vpop.xlane.xlu0 %1090
  %v1092 = vsel %vm1051, %v1015, 0.0
  %v1093 = vadd.f32 %v1013, %v1092
  %1094 = vadd.xlane.f32.xlu0 %v1093
  %v1095 = vpop.xlane.xlu0 %1094
  %v1096 = vsel %vm1051, %v1019, 0.0
  %v1097 = vadd.f32 %v1017, %v1096
  %1098 = vadd.xlane.f32.xlu0 %v1097
  %v1099 = vpop.xlane.xlu0 %1098
  %v1100 = vsel %vm1051, %v1025, 0.0
  %v1101 = vadd.f32 %v1023, %v1100
  %1102 = vadd.xlane.f32.xlu0 %v1101
  %v1103 = vpop.xlane.xlu0 %1102
  %v1104 = vsel %vm1051, %v1029, 0.0
  %v1105 = vadd.f32 %v1027, %v1104
  %1106 = vadd.xlane.f32.xlu0 %v1105
  %v1107 = vpop.xlane.xlu0 %1106
  %v1108 = vsel %vm1051, %v1035, 0.0
  %v1109 = vadd.f32 %v1033, %v1108
  %1110 = vadd.xlane.f32.xlu0 %v1109
  %v1111 = vpop.xlane.xlu0 %1110
  %v1112 = vsel %vm1051, %v1039, 0.0
  %v1113 = vadd.f32 %v1037, %v1112
  %1114 = vadd.xlane.f32.xlu0 %v1113
  %v1115 = vpop.xlane.xlu0 %1114
  %v1116 = vsel %vm1051, %v1045, 0.0
  %v1117 = vadd.f32 %v1043, %v1116
  %1118 = vadd.xlane.f32.xlu0 %v1117
  %v1119 = vpop.xlane.xlu0 %1118
  %v1120 = vsel %vm1051, %v1049, 0.0
  %v1121 = vadd.f32 %v1047, %v1120
  %1122 = vadd.xlane.f32.xlu0 %v1121
  %v1123 = vpop.xlane.xlu0 %1122
  %v1124 = vrcp.pop 196.0
  %v1125 = vmul.f32 %v1055, %v1124
  %v1126 = vmul.f32 %v1059, %v1124
  %v1127 = vmul.f32 %v1063, %v1124
  %v1128 = vmul.f32 %v1067, %v1124
  %v1129 = vmul.f32 %v1071, %v1124
  %v1130 = vmul.f32 %v1075, %v1124
  %v1131 = vmul.f32 %v1079, %v1124
  %v1132 = vmul.f32 %v1083, %v1124
  %v1133 = vmul.f32 %v1087, %v1124
  %v1134 = vmul.f32 %v1091, %v1124
  %v1135 = vmul.f32 %v1095, %v1124
  %v1136 = vmul.f32 %v1099, %v1124
  %v1137 = vmul.f32 %v1103, %v1124
  %v1138 = vmul.f32 %v1107, %v1124
  %v1139 = vmul.f32 %v1111, %v1124
  %v1140 = vmul.f32 %v1115, %v1124
  %v1141 = vmul.f32 %v1119, %v1124
  %v1142 = vmul.f32 %v1123, %v1124
  %v1143 = vsub.f32 %v963, %v1125
  %v1144 = vsub.f32 %v965, %v1125
  %v1145 = vsub.f32 %v967, %v1126
  %v1146 = vsub.f32 %v969, %v1126
  %v1147 = vsub.f32 %v973, %v1127
  %v1148 = vsub.f32 %v975, %v1127
  %v1149 = vsub.f32 %v977, %v1128
  %v1150 = vsub.f32 %v979, %v1128
  %v1151 = vsub.f32 %v983, %v1129
  %v1152 = vsub.f32 %v985, %v1129
  %v1153 = vsub.f32 %v987, %v1130
  %v1154 = vsub.f32 %v989, %v1130
  %v1155 = vsub.f32 %v993, %v1131
  %v1156 = vsub.f32 %v995, %v1131
  %v1157 = vsub.f32 %v997, %v1132
  %v1158 = vsub.f32 %v999, %v1132
  %v1159 = vsub.f32 %v1003, %v1133
  %v1160 = vsub.f32 %v1005, %v1133
  %v1161 = vsub.f32 %v1007, %v1134
  %v1162 = vsub.f32 %v1009, %v1134
  %v1163 = vsub.f32 %v1013, %v1135
  %v1164 = vsub.f32 %v1015, %v1135
  %v1165 = vsub.f32 %v1017, %v1136
  %v1166 = vsub.f32 %v1019, %v1136
  %v1167 = vsub.f32 %v1023, %v1137
  %v1168 = vsub.f32 %v1025, %v1137
  %v1169 = vsub.f32 %v1027, %v1138
  %v1170 = vsub.f32 %v1029, %v1138
  %v1171 = vsub.f32 %v1033, %v1139
  %v1172 = vsub.f32 %v1035, %v1139
  %v1173 = vsub.f32 %v1037, %v1140
  %v1174 = vsub.f32 %v1039, %v1140
  %v1175 = vsub.f32 %v1043, %v1141
  %v1176 = vsub.f32 %v1045, %v1141
  %v1177 = vsub.f32 %v1047, %v1142
  %v1178 = vsub.f32 %v1049, %v1142
  %v1179 = vmul.f32 %v1143, %v1143
  %v1180 = vmul.f32 %v1144, %v1144
  %v1181 = vmul.f32 %v1145, %v1145
  %v1182 = vmul.f32 %v1146, %v1146
  %v1183 = vmul.f32 %v1147, %v1147
  %v1184 = vmul.f32 %v1148, %v1148
  %v1185 = vmul.f32 %v1149, %v1149
  %v1186 = vmul.f32 %v1150, %v1150
  %v1187 = vmul.f32 %v1151, %v1151
  %v1188 = vmul.f32 %v1152, %v1152
  %v1189 = vmul.f32 %v1153, %v1153
  %v1190 = vmul.f32 %v1154, %v1154
  %v1191 = vmul.f32 %v1155, %v1155
  %v1192 = vmul.f32 %v1156, %v1156
  %v1193 = vmul.f32 %v1157, %v1157
  %v1194 = vmul.f32 %v1158, %v1158
  %v1195 = vmul.f32 %v1159, %v1159
  %v1196 = vmul.f32 %v1160, %v1160
  %v1197 = vmul.f32 %v1161, %v1161
  %v1198 = vmul.f32 %v1162, %v1162
  %v1199 = vmul.f32 %v1163, %v1163
  %v1200 = vmul.f32 %v1164, %v1164
  %v1201 = vmul.f32 %v1165, %v1165
  %v1202 = vmul.f32 %v1166, %v1166
  %v1203 = vmul.f32 %v1167, %v1167
  %v1204 = vmul.f32 %v1168, %v1168
  %v1205 = vmul.f32 %v1169, %v1169
  %v1206 = vmul.f32 %v1170, %v1170
  %v1207 = vmul.f32 %v1171, %v1171
  %v1208 = vmul.f32 %v1172, %v1172
  %v1209 = vmul.f32 %v1173, %v1173
  %v1210 = vmul.f32 %v1174, %v1174
  %v1211 = vmul.f32 %v1175, %v1175
  %v1212 = vmul.f32 %v1176, %v1176
  %v1213 = vmul.f32 %v1177, %v1177
  %v1214 = vmul.f32 %v1178, %v1178
  %v1215 = vsel %vm1051, %v1180, 0.0
  %v1216 = vadd.f32 %v1179, %v1215
  %1217 = vadd.xlane.f32.xlu0 %v1216
  %v1218 = vpop.xlane.xlu0 %1217
  %v1219 = vsel %vm1051, %v1182, 0.0
  %v1220 = vadd.f32 %v1181, %v1219
  %1221 = vadd.xlane.f32.xlu0 %v1220
  %v1222 = vpop.xlane.xlu0 %1221
  %v1223 = vsel %vm1051, %v1184, 0.0
  %v1224 = vadd.f32 %v1183, %v1223
  %1225 = vadd.xlane.f32.xlu0 %v1224
  %v1226 = vpop.xlane.xlu0 %1225
  %v1227 = vsel %vm1051, %v1186, 0.0
  %v1228 = vadd.f32 %v1185, %v1227
  %1229 = vadd.xlane.f32.xlu0 %v1228
  %v1230 = vpop.xlane.xlu0 %1229
  %v1231 = vsel %vm1051, %v1188, 0.0
  %v1232 = vadd.f32 %v1187, %v1231
  %1233 = vadd.xlane.f32.xlu0 %v1232
  %v1234 = vpop.xlane.xlu0 %1233
  %v1235 = vsel %vm1051, %v1190, 0.0
  %v1236 = vadd.f32 %v1189, %v1235
  %1237 = vadd.xlane.f32.xlu0 %v1236
  %v1238 = vpop.xlane.xlu0 %1237
  %v1239 = vsel %vm1051, %v1192, 0.0
  %v1240 = vadd.f32 %v1191, %v1239
  %1241 = vadd.xlane.f32.xlu0 %v1240
  %v1242 = vpop.xlane.xlu0 %1241
  %v1243 = vsel %vm1051, %v1194, 0.0
  %v1244 = vadd.f32 %v1193, %v1243
  %1245 = vadd.xlane.f32.xlu0 %v1244
  %v1246 = vpop.xlane.xlu0 %1245
  %v1247 = vsel %vm1051, %v1196, 0.0
  %v1248 = vadd.f32 %v1195, %v1247
  %1249 = vadd.xlane.f32.xlu0 %v1248
  %v1250 = vpop.xlane.xlu0 %1249
  %v1251 = vsel %vm1051, %v1198, 0.0
  %v1252 = vadd.f32 %v1197, %v1251
  %1253 = vadd.xlane.f32.xlu0 %v1252
  %v1254 = vpop.xlane.xlu0 %1253
  %v1255 = vsel %vm1051, %v1200, 0.0
  %v1256 = vadd.f32 %v1199, %v1255
  %1257 = vadd.xlane.f32.xlu0 %v1256
  %v1258 = vpop.xlane.xlu0 %1257
  %v1259 = vsel %vm1051, %v1202, 0.0
  %v1260 = vadd.f32 %v1201, %v1259
  %1261 = vadd.xlane.f32.xlu0 %v1260
  %v1262 = vpop.xlane.xlu0 %1261
  %v1263 = vsel %vm1051, %v1204, 0.0
  %v1264 = vadd.f32 %v1203, %v1263
  %1265 = vadd.xlane.f32.xlu0 %v1264
  %v1266 = vpop.xlane.xlu0 %1265
  %v1267 = vsel %vm1051, %v1206, 0.0
  %v1268 = vadd.f32 %v1205, %v1267
  %1269 = vadd.xlane.f32.xlu0 %v1268
  %v1270 = vpop.xlane.xlu0 %1269
  %v1271 = vsel %vm1051, %v1208, 0.0
  %v1272 = vadd.f32 %v1207, %v1271
  %1273 = vadd.xlane.f32.xlu0 %v1272
  %v1274 = vpop.xlane.xlu0 %1273
  %v1275 = vsel %vm1051, %v1210, 0.0
  %v1276 = vadd.f32 %v1209, %v1275
  %1277 = vadd.xlane.f32.xlu0 %v1276
  %v1278 = vpop.xlane.xlu0 %1277
  %v1279 = vsel %vm1051, %v1212, 0.0
  %v1280 = vadd.f32 %v1211, %v1279
  %1281 = vadd.xlane.f32.xlu0 %v1280
  %v1282 = vpop.xlane.xlu0 %1281
  %v1283 = vsel %vm1051, %v1214, 0.0
  %v1284 = vadd.f32 %v1213, %v1283
  %1285 = vadd.xlane.f32.xlu0 %v1284
  %v1286 = vpop.xlane.xlu0 %1285
  %v1287 = vmul.f32 %v1218, %v1124
  %v1288 = vmul.f32 %v1222, %v1124
  %v1289 = vmul.f32 %v1226, %v1124
  %v1290 = vmul.f32 %v1230, %v1124
  %v1291 = vmul.f32 %v1234, %v1124
  %v1292 = vmul.f32 %v1238, %v1124
  %v1293 = vmul.f32 %v1242, %v1124
  %v1294 = vmul.f32 %v1246, %v1124
  %v1295 = vmul.f32 %v1250, %v1124
  %v1296 = vmul.f32 %v1254, %v1124
  %v1297 = vmul.f32 %v1258, %v1124
  %v1298 = vmul.f32 %v1262, %v1124
  %v1299 = vmul.f32 %v1266, %v1124
  %v1300 = vmul.f32 %v1270, %v1124
  %v1301 = vmul.f32 %v1274, %v1124
  %v1302 = vmul.f32 %v1278, %v1124
  %v1303 = vmul.f32 %v1282, %v1124
  %v1304 = vmul.f32 %v1286, %v1124
  %v1305 = vadd.f32 %v1287, 1e-05
  %v1306 = vadd.f32 %v1288, 1e-05
  %v1307 = vadd.f32 %v1289, 1e-05
  %v1308 = vadd.f32 %v1290, 1e-05
  %v1309 = vadd.f32 %v1291, 1e-05
  %v1310 = vadd.f32 %v1292, 1e-05
  %v1311 = vadd.f32 %v1293, 1e-05
  %v1312 = vadd.f32 %v1294, 1e-05
  %v1313 = vadd.f32 %v1295, 1e-05
  %v1314 = vadd.f32 %v1296, 1e-05
  %v1315 = vadd.f32 %v1297, 1e-05
  %v1316 = vadd.f32 %v1298, 1e-05
  %v1317 = vadd.f32 %v1299, 1e-05
  %v1318 = vadd.f32 %v1300, 1e-05
  %v1319 = vadd.f32 %v1301, 1e-05
  %v1320 = vadd.f32 %v1302, 1e-05
  %v1321 = vadd.f32 %v1303, 1e-05
  %v1322 = vadd.f32 %v1304, 1e-05
  %v1323 = vrsqrt.pop %v1305
  %v1324 = vrsqrt.pop %v1306
  %v1325 = vrsqrt.pop %v1307
  %v1326 = vrsqrt.pop %v1308
  %v1327 = vrsqrt.pop %v1309
  %v1328 = vrsqrt.pop %v1310
  %v1329 = vrsqrt.pop %v1311
  %v1330 = vrsqrt.pop %v1312
  %v1331 = vrsqrt.pop %v1313
  %v1332 = vrsqrt.pop %v1314
  %v1333 = vrsqrt.pop %v1315
  %v1334 = vrsqrt.pop %v1316
  %v1335 = vrsqrt.pop %v1317
  %v1336 = vrsqrt.pop %v1318
  %v1337 = vrsqrt.pop %v1319
  %v1338 = vrsqrt.pop %v1320
  %v1339 = vrsqrt.pop %v1321
  %v1340 = vrsqrt.pop %v1322
  %v1341 = vld [vmem:[%s2] sm:$0xff]
  %v1342 = vld [vmem:[%s2 + $0x8] sm:$0xff]
  %v1343 = vld [vmem:[%s2 + $0x10] sm:$0xff]
  %v1344 = vld [vmem:[%s2 + $0x18] sm:$0xff]
  %v1345 = vld [vmem:[%s2 + $0x20] sm:$0xff]
  %v1346 = vld [vmem:[%s2 + $0x28] sm:$0xff]
  %v1347 = vld [vmem:[%s2 + $0x30] sm:$0xff]
  %v1348 = vld [vmem:[%s2 + $0x38] sm:$0xff]
  %v1349 = vld [vmem:[%s2 + $0x40] sm:$0xff]
  %v1350 = vld [vmem:[%s2 + $0x48] sm:$0xff]
  %v1351 = vld [vmem:[%s2 + $0x50] sm:$0xff]
  %v1352 = vld [vmem:[%s2 + $0x58] sm:$0xff]
  %v1353 = vld [vmem:[%s2 + $0x60] sm:$0xff]
  %v1354 = vld [vmem:[%s2 + $0x68] sm:$0xff]
  %v1355 = vld [vmem:[%s2 + $0x70] sm:$0xff]
  %v1356 = vld [vmem:[%s2 + $0x78] sm:$0xff]
  %v1357 = vld [vmem:[%s2 + $0x80] sm:$0xff]
  %v1358 = vld [vmem:[%s2 + $0x88] sm:$0xff]
  %v1359 = vmul.f32 %v1341, %v1323
  %v1360 = vmul.f32 %v1342, %v1324
  %v1361 = vmul.f32 %v1343, %v1325
  %v1362 = vmul.f32 %v1344, %v1326
  %v1363 = vmul.f32 %v1345, %v1327
  %v1364 = vmul.f32 %v1346, %v1328
  %v1365 = vmul.f32 %v1347, %v1329
  %v1366 = vmul.f32 %v1348, %v1330
  %v1367 = vmul.f32 %v1349, %v1331
  %v1368 = vmul.f32 %v1350, %v1332
  %v1369 = vmul.f32 %v1351, %v1333
  %v1370 = vmul.f32 %v1352, %v1334
  %v1371 = vmul.f32 %v1353, %v1335
  %v1372 = vmul.f32 %v1354, %v1336
  %v1373 = vmul.f32 %v1355, %v1337
  %v1374 = vmul.f32 %v1356, %v1338
  %v1375 = vmul.f32 %v1357, %v1339
  %v1376 = vmul.f32 %v1358, %v1340
  %1378 = vset.pattern.permute.xlu0 0
  %1379 = vperm.xlu0 %1378, %v1359
  %v1380 = vpop.permute.xlu0 %1379
  %1383 = vset.pattern.permute.xlu0 0
  %1384 = vperm.xlu0 %1383, %v1360
  %v1385 = vpop.permute.xlu0 %1384
  %1388 = vset.pattern.permute.xlu0 0
  %1389 = vperm.xlu0 %1388, %v1361
  %v1390 = vpop.permute.xlu0 %1389
  %1393 = vset.pattern.permute.xlu0 0
  %1394 = vperm.xlu0 %1393, %v1362
  %v1395 = vpop.permute.xlu0 %1394
  %1398 = vset.pattern.permute.xlu0 0
  %1399 = vperm.xlu0 %1398, %v1363
  %v1400 = vpop.permute.xlu0 %1399
  %1403 = vset.pattern.permute.xlu0 0
  %1404 = vperm.xlu0 %1403, %v1364
  %v1405 = vpop.permute.xlu0 %1404
  %1408 = vset.pattern.permute.xlu0 0
  %1409 = vperm.xlu0 %1408, %v1365
  %v1410 = vpop.permute.xlu0 %1409
  %1413 = vset.pattern.permute.xlu0 0
  %1414 = vperm.xlu0 %1413, %v1366
  %v1415 = vpop.permute.xlu0 %1414
  %1418 = vset.pattern.permute.xlu0 0
  %1419 = vperm.xlu0 %1418, %v1367
  %v1420 = vpop.permute.xlu0 %1419
  %1423 = vset.pattern.permute.xlu0 0
  %1424 = vperm.xlu0 %1423, %v1368
  %v1425 = vpop.permute.xlu0 %1424
  %1428 = vset.pattern.permute.xlu0 0
  %1429 = vperm.xlu0 %1428, %v1369
  %v1430 = vpop.permute.xlu0 %1429
  %1433 = vset.pattern.permute.xlu0 0
  %1434 = vperm.xlu0 %1433, %v1370
  %v1435 = vpop.permute.xlu0 %1434
  %1438 = vset.pattern.permute.xlu0 0
  %1439 = vperm.xlu0 %1438, %v1371
  %v1440 = vpop.permute.xlu0 %1439
  %1443 = vset.pattern.permute.xlu0 0
  %1444 = vperm.xlu0 %1443, %v1372
  %v1445 = vpop.permute.xlu0 %1444
  %1448 = vset.pattern.permute.xlu0 0
  %1449 = vperm.xlu0 %1448, %v1373
  %v1450 = vpop.permute.xlu0 %1449
  %1453 = vset.pattern.permute.xlu0 0
  %1454 = vperm.xlu0 %1453, %v1374
  %v1455 = vpop.permute.xlu0 %1454
  %1458 = vset.pattern.permute.xlu0 0
  %1459 = vperm.xlu0 %1458, %v1375
  %v1460 = vpop.permute.xlu0 %1459
  %1463 = vset.pattern.permute.xlu0 0
  %1464 = vperm.xlu0 %1463, %v1376
  %v1465 = vpop.permute.xlu0 %1464
  %v1467 = vmul.f32 %v1143, %v1380
  %v1468 = vmul.f32 %v1144, %v1380
  %v1469 = vmul.f32 %v1145, %v1385
  %v1470 = vmul.f32 %v1146, %v1385
  %v1471 = vmul.f32 %v1147, %v1390
  %v1472 = vmul.f32 %v1148, %v1390
  %v1473 = vmul.f32 %v1149, %v1395
  %v1474 = vmul.f32 %v1150, %v1395
  %v1475 = vmul.f32 %v1151, %v1400
  %v1476 = vmul.f32 %v1152, %v1400
  %v1477 = vmul.f32 %v1153, %v1405
  %v1478 = vmul.f32 %v1154, %v1405
  %v1479 = vmul.f32 %v1155, %v1410
  %v1480 = vmul.f32 %v1156, %v1410
  %v1481 = vmul.f32 %v1157, %v1415
  %v1482 = vmul.f32 %v1158, %v1415
  %v1483 = vmul.f32 %v1159, %v1420
  %v1484 = vmul.f32 %v1160, %v1420
  %v1485 = vmul.f32 %v1161, %v1425
  %v1486 = vmul.f32 %v1162, %v1425
  %v1487 = vmul.f32 %v1163, %v1430
  %v1488 = vmul.f32 %v1164, %v1430
  %v1489 = vmul.f32 %v1165, %v1435
  %v1490 = vmul.f32 %v1166, %v1435
  %v1491 = vmul.f32 %v1167, %v1440
  %v1492 = vmul.f32 %v1168, %v1440
  %v1493 = vmul.f32 %v1169, %v1445
  %v1494 = vmul.f32 %v1170, %v1445
  %v1495 = vmul.f32 %v1171, %v1450
  %v1496 = vmul.f32 %v1172, %v1450
  %v1497 = vmul.f32 %v1173, %v1455
  %v1498 = vmul.f32 %v1174, %v1455
  %v1499 = vmul.f32 %v1175, %v1460
  %v1500 = vmul.f32 %v1176, %v1460
  %v1501 = vmul.f32 %v1177, %v1465
  %v1502 = vmul.f32 %v1178, %v1465
  %v1503 = vld [vmem:[%s3] sm:$0xff]
  %v1504 = vld [vmem:[%s3 + $0x8] sm:$0xff]
  %v1505 = vld [vmem:[%s3 + $0x10] sm:$0xff]
  %v1506 = vld [vmem:[%s3 + $0x18] sm:$0xff]
  %v1507 = vld [vmem:[%s3 + $0x20] sm:$0xff]
  %v1508 = vld [vmem:[%s3 + $0x28] sm:$0xff]
  %v1509 = vld [vmem:[%s3 + $0x30] sm:$0xff]
  %v1510 = vld [vmem:[%s3 + $0x38] sm:$0xff]
  %v1511 = vld [vmem:[%s3 + $0x40] sm:$0xff]
  %v1512 = vld [vmem:[%s3 + $0x48] sm:$0xff]
  %v1513 = vld [vmem:[%s3 + $0x50] sm:$0xff]
  %v1514 = vld [vmem:[%s3 + $0x58] sm:$0xff]
  %v1515 = vld [vmem:[%s3 + $0x60] sm:$0xff]
  %v1516 = vld [vmem:[%s3 + $0x68] sm:$0xff]
  %v1517 = vld [vmem:[%s3 + $0x70] sm:$0xff]
  %v1518 = vld [vmem:[%s3 + $0x78] sm:$0xff]
  %v1519 = vld [vmem:[%s3 + $0x80] sm:$0xff]
  %v1520 = vld [vmem:[%s3 + $0x88] sm:$0xff]
  %1522 = vset.pattern.permute.xlu0 0
  %1523 = vperm.xlu0 %1522, %v1503
  %v1524 = vpop.permute.xlu0 %1523
  %1527 = vset.pattern.permute.xlu0 0
  %1528 = vperm.xlu0 %1527, %v1504
  %v1529 = vpop.permute.xlu0 %1528
  %1532 = vset.pattern.permute.xlu0 0
  %1533 = vperm.xlu0 %1532, %v1505
  %v1534 = vpop.permute.xlu0 %1533
  %1537 = vset.pattern.permute.xlu0 0
  %1538 = vperm.xlu0 %1537, %v1506
  %v1539 = vpop.permute.xlu0 %1538
  %1542 = vset.pattern.permute.xlu0 0
  %1543 = vperm.xlu0 %1542, %v1507
  %v1544 = vpop.permute.xlu0 %1543
  %1547 = vset.pattern.permute.xlu0 0
  %1548 = vperm.xlu0 %1547, %v1508
  %v1549 = vpop.permute.xlu0 %1548
  %1552 = vset.pattern.permute.xlu0 0
  %1553 = vperm.xlu0 %1552, %v1509
  %v1554 = vpop.permute.xlu0 %1553
  %1557 = vset.pattern.permute.xlu0 0
  %1558 = vperm.xlu0 %1557, %v1510
  %v1559 = vpop.permute.xlu0 %1558
  %1562 = vset.pattern.permute.xlu0 0
  %1563 = vperm.xlu0 %1562, %v1511
  %v1564 = vpop.permute.xlu0 %1563
  %1567 = vset.pattern.permute.xlu0 0
  %1568 = vperm.xlu0 %1567, %v1512
  %v1569 = vpop.permute.xlu0 %1568
  %1572 = vset.pattern.permute.xlu0 0
  %1573 = vperm.xlu0 %1572, %v1513
  %v1574 = vpop.permute.xlu0 %1573
  %1577 = vset.pattern.permute.xlu0 0
  %1578 = vperm.xlu0 %1577, %v1514
  %v1579 = vpop.permute.xlu0 %1578
  %1582 = vset.pattern.permute.xlu0 0
  %1583 = vperm.xlu0 %1582, %v1515
  %v1584 = vpop.permute.xlu0 %1583
  %1587 = vset.pattern.permute.xlu0 0
  %1588 = vperm.xlu0 %1587, %v1516
  %v1589 = vpop.permute.xlu0 %1588
  %1592 = vset.pattern.permute.xlu0 0
  %1593 = vperm.xlu0 %1592, %v1517
  %v1594 = vpop.permute.xlu0 %1593
  %1597 = vset.pattern.permute.xlu0 0
  %1598 = vperm.xlu0 %1597, %v1518
  %v1599 = vpop.permute.xlu0 %1598
  %1602 = vset.pattern.permute.xlu0 0
  %1603 = vperm.xlu0 %1602, %v1519
  %v1604 = vpop.permute.xlu0 %1603
  %1607 = vset.pattern.permute.xlu0 0
  %1608 = vperm.xlu0 %1607, %v1520
  %v1609 = vpop.permute.xlu0 %1608
  %v1611 = vadd.f32 %v1467, %v1524
  %v1612 = vadd.f32 %v1468, %v1524
  %v1613 = vadd.f32 %v1469, %v1529
  %v1614 = vadd.f32 %v1470, %v1529
  %v1615 = vadd.f32 %v1471, %v1534
  %v1616 = vadd.f32 %v1472, %v1534
  %v1617 = vadd.f32 %v1473, %v1539
  %v1618 = vadd.f32 %v1474, %v1539
  %v1619 = vadd.f32 %v1475, %v1544
  %v1620 = vadd.f32 %v1476, %v1544
  %v1621 = vadd.f32 %v1477, %v1549
  %v1622 = vadd.f32 %v1478, %v1549
  %v1623 = vadd.f32 %v1479, %v1554
  %v1624 = vadd.f32 %v1480, %v1554
  %v1625 = vadd.f32 %v1481, %v1559
  %v1626 = vadd.f32 %v1482, %v1559
  %v1627 = vadd.f32 %v1483, %v1564
  %v1628 = vadd.f32 %v1484, %v1564
  %v1629 = vadd.f32 %v1485, %v1569
  %v1630 = vadd.f32 %v1486, %v1569
  %v1631 = vadd.f32 %v1487, %v1574
  %v1632 = vadd.f32 %v1488, %v1574
  %v1633 = vadd.f32 %v1489, %v1579
  %v1634 = vadd.f32 %v1490, %v1579
  %v1635 = vadd.f32 %v1491, %v1584
  %v1636 = vadd.f32 %v1492, %v1584
  %v1637 = vadd.f32 %v1493, %v1589
  %v1638 = vadd.f32 %v1494, %v1589
  %v1639 = vadd.f32 %v1495, %v1594
  %v1640 = vadd.f32 %v1496, %v1594
  %v1641 = vadd.f32 %v1497, %v1599
  %v1642 = vadd.f32 %v1498, %v1599
  %v1643 = vadd.f32 %v1499, %v1604
  %v1644 = vadd.f32 %v1500, %v1604
  %v1645 = vadd.f32 %v1501, %v1609
  %v1646 = vadd.f32 %v1502, %v1609
  %1647 = vst [vmem:[%s4] sm:$0xff] %v1611
  %1648 = vst.msk [vmem:[%s4 + $0x8] sm:$0xff] %vm1051, %v1612
  %1649 = vst [vmem:[%s4 + $0x10] sm:$0xff] %v1613
  %1650 = vst.msk [vmem:[%s4 + $0x18] sm:$0xff] %vm1051, %v1614
  %1651 = vst [vmem:[%s4 + $0x20] sm:$0xff] %v1615
  %1652 = vst.msk [vmem:[%s4 + $0x28] sm:$0xff] %vm1051, %v1616
  %1653 = vst [vmem:[%s4 + $0x30] sm:$0xff] %v1617
  %1654 = vst.msk [vmem:[%s4 + $0x38] sm:$0xff] %vm1051, %v1618
  %1655 = vst [vmem:[%s4 + $0x40] sm:$0xff] %v1619
  %1656 = vst.msk [vmem:[%s4 + $0x48] sm:$0xff] %vm1051, %v1620
  %1657 = vst [vmem:[%s4 + $0x50] sm:$0xff] %v1621
  %1658 = vst.msk [vmem:[%s4 + $0x58] sm:$0xff] %vm1051, %v1622
  %1659 = vst [vmem:[%s4 + $0x60] sm:$0xff] %v1623
  %1660 = vst.msk [vmem:[%s4 + $0x68] sm:$0xff] %vm1051, %v1624
  %1661 = vst [vmem:[%s4 + $0x70] sm:$0xff] %v1625
  %1662 = vst.msk [vmem:[%s4 + $0x78] sm:$0xff] %vm1051, %v1626
  %1663 = vst [vmem:[%s4 + $0x80] sm:$0xff] %v1627
  %1664 = vst.msk [vmem:[%s4 + $0x88] sm:$0xff] %vm1051, %v1628
  %1665 = vst [vmem:[%s4 + $0x90] sm:$0xff] %v1629
  %1666 = vst.msk [vmem:[%s4 + $0x98] sm:$0xff] %vm1051, %v1630
  %1667 = vst [vmem:[%s4 + $0xa0] sm:$0xff] %v1631
  %1668 = vst.msk [vmem:[%s4 + $0xa8] sm:$0xff] %vm1051, %v1632
  %1669 = vst [vmem:[%s4 + $0xb0] sm:$0xff] %v1633
  %1670 = vst.msk [vmem:[%s4 + $0xb8] sm:$0xff] %vm1051, %v1634
  %1671 = vst [vmem:[%s4 + $0xc0] sm:$0xff] %v1635
  %1672 = vst.msk [vmem:[%s4 + $0xc8] sm:$0xff] %vm1051, %v1636
  %1673 = vst [vmem:[%s4 + $0xd0] sm:$0xff] %v1637
  %1674 = vst.msk [vmem:[%s4 + $0xd8] sm:$0xff] %vm1051, %v1638
  %1675 = vst [vmem:[%s4 + $0xe0] sm:$0xff] %v1639
  %1676 = vst.msk [vmem:[%s4 + $0xe8] sm:$0xff] %vm1051, %v1640
  %1677 = vst [vmem:[%s4 + $0xf0] sm:$0xff] %v1641
  %1678 = vst.msk [vmem:[%s4 + $0xf8] sm:$0xff] %vm1051, %v1642
  %1679 = vst [vmem:[%s4 + $0x100] sm:$0xff] %v1643
  %1680 = vst.msk [vmem:[%s4 + $0x108] sm:$0xff] %vm1051, %v1644
  %1681 = vst [vmem:[%s4 + $0x110] sm:$0xff] %v1645
  %1682 = vst.msk [vmem:[%s4 + $0x118] sm:$0xff] %vm1051, %v1646
  // Predicated region
  $region18: #{conv1x1_bn.1} parent=0 // pred_check
    _
  $region19: #{conv1x1_bn.1} parent=0 // pred_check_branch
    %1684 = sbr.rel (0) target = $region21
  $region20: #{conv1x1_bn.1} parent=0 // pred_region
    _
  $region21: #{conv1x1_bn.1} parent=0 // pred_fallthru
    _
  // Predicated region
  $region22: #{conv1x1_bn.1} parent=0 // pred_check
    _
  $region23: #{conv1x1_bn.1} parent=0 // pred_check_branch
    %1686 = sbr.rel (0) target = $region25
  $region24: #{conv1x1_bn.1} parent=0 // pred_region
    _
  $region25: #{conv1x1_bn.1} parent=0 // pred_fallthru
    _

</llo_original>
